<compile_context>
chip_gen: v7x
topology: tpu7x:2x2x1
jax: 0.10.0
libtpu: 0.0.40
codegen_flags: <defaults>
</compile_context>

<pallas_src>
import functools

import jax
import jax.numpy as jnp
from jax import lax
from jax.experimental import pallas as pl
from jax.experimental.pallas import tpu as pltpu


def _conv_rows_kernel(x_ref, a1_ref, b1_ref, d2_ref, b2_ref, a3_ref, b3_ref,
                      out_ref, *, H):
    """One batch-block: rows = B_blk*H stacked image rows, lanes = W*C.

    x_ref  : (R, W*C_IN)           f32   input rows
    a1_ref : (3*W*C_IN,  W*C_HID)  bf16  conv1 3x3 weights (ky folded into K)
    b1_ref : (1, W*C_HID)          f32
    d2_ref : (W*C_HID, W*C_HID)    bf16  block-diagonal 1x1 conv weights
    b2_ref : (1, W*C_HID)          f32
    a3_ref : (3*W*C_HID, W*C_OUT)  bf16  conv3 3x3 weights (ky folded into K)
    b3_ref : (1, W*C_OUT)          f32
    out_ref: (R, W*C_OUT)          f32   lane-dense output rows
    """
    f32 = jnp.float32
    bf16 = jnp.bfloat16

    R = x_ref.shape[0]
    # Per-image y index of every tile row; the masks implement the zero padding
    # at the top/bottom image borders and kill cross-image leakage of the row
    # shifts (R is a multiple of H, images are stacked contiguously).
    y = lax.broadcasted_iota(jnp.int32, (R, 1), 0) % H
    not_top = (y != 0).astype(f32)       # row y-1 exists inside the same image
    not_bot = (y != H - 1).astype(f32)   # row y+1 exists inside the same image

    def shift_cat(v):
        """[row y-1 | row y | row y+1] along lanes, zeroed at image borders."""
        n = v.shape[0]
        v_dn = pltpu.roll(v, 1, axis=0) * not_top        # v_dn[r] = v[r-1]
        v_up = pltpu.roll(v, n - 1, axis=0) * not_bot    # v_up[r] = v[r+1]
        return jnp.concatenate([v_dn, v, v_up], axis=-1)

    # ---- conv1: 3x3, padding=1 (x- and y-taps folded into one matmul) ----
    x_cat = shift_cat(x_ref[...]).astype(bf16)           # (R, 3*W*C_IN)
    h1 = jnp.dot(x_cat, a1_ref[...], preferred_element_type=f32) + b1_ref[...]
    h1 = jnp.maximum(h1, 0.0).astype(bf16)               # ReLU

    # ---- conv2: 1x1 (block-diagonal matmul) ----
    h2 = jnp.dot(h1, d2_ref[...], preferred_element_type=f32) + b2_ref[...]
    h2 = jnp.maximum(h2, 0.0)                            # ReLU (f32 for the roll)

    # ---- conv3: 3x3, padding=1 (zero-initialized in the module) ----
    h2_cat = shift_cat(h2).astype(bf16)                  # (R, 3*W*C_HID)
    out = jnp.dot(h2_cat, a3_ref[...], preferred_element_type=f32) + b3_ref[...]
    out_ref[...] = out.astype(out_ref.dtype)


def prepare_weights(params, W):
    """One-time parameter preprocessing (call ONCE per parameter set, outside
    the per-step forward).  Folds the 3x3 convs' x-taps and ky-taps into dense
    banded matmul weights and block-diagonalizes the 1x1 conv."""
    w1, b1, w2, b2, w3, b3 = params
    f32, bf16 = jnp.float32, jnp.bfloat16

    def folded_3x3(w):                    # w: (ky, kx, cin, cout)
        cin, cout = w.shape[2], w.shape[3]
        xi = jnp.arange(W)[:, None]
        xo = jnp.arange(W)[None, :]
        # sel[kx, xi, xo] = 1 iff input column xi feeds output column xo via
        # x-tap kx of a padding-1 3x3 conv.
        sel = jnp.stack([(xi == xo + kx - 1) for kx in range(3)]).astype(f32)
        a = jnp.einsum("kio,ykcd->yicod", sel, w.astype(f32))  # (ky,xi,ci,xo,co)
        return a.reshape(3 * W * cin, W * cout).astype(bf16)

    a1 = folded_3x3(w1)                                    # (3*W*C_IN,  W*C_HID)
    a3 = folded_3x3(w3)                                    # (3*W*C_HID, W*C_OUT)
    d2 = jnp.kron(jnp.eye(W, dtype=f32), w2.astype(f32)).astype(bf16)
    b1row = jnp.tile(b1.astype(f32), W)[None, :]           # (1, W*C_HID)
    b2row = jnp.tile(b2.astype(f32), W)[None, :]
    b3row = jnp.tile(b3.astype(f32), W)[None, :]           # (1, W*C_OUT)
    return (a1, b1row, d2, b2row, a3, b3row)


def _pick_batch_block(B, H, max_rows=512):
    """Largest batch block (rows = bblk*H) within ~max_rows rows: fills the
    MXU M-dimension instead of serializing many tiny grid steps."""
    best = 1
    for cand in range(1, B + 1):
        if B % cand == 0 and cand * H <= max_rows:
            best = cand
    return best


@jax.jit
def simple_conv_net_forward(x_nchw, prepared):
    """Forward pass matching the PyTorch SimpleConvNet.

    x_nchw: (B, C_in, H, W); prepared: output of prepare_weights(params, W).
    """
    a1, b1row, d2, b2row, a3, b3row = prepared
    B, C_IN, H, W = x_nchw.shape
    C_OUT = a3.shape[1] // W

    # Lane-dense row layout: rows = B*H, lanes = W*C_IN.
    xrows = jnp.transpose(x_nchw, (0, 2, 3, 1)).reshape(B * H, W * C_IN)
    xrows = xrows.astype(jnp.float32)

    bblk = _pick_batch_block(B, H)
    R = bblk * H
    nblk = B // bblk

    kernel = functools.partial(_conv_rows_kernel, H=H)
    out_rows = pl.pallas_call(
        kernel,
        out_shape=jax.ShapeDtypeStruct((B * H, W * C_OUT), jnp.float32),
        grid_spec=pltpu.PrefetchScalarGridSpec(
            num_scalar_prefetch=0,
            grid=(nblk,),
            in_specs=[
                pl.BlockSpec((R, W * C_IN), lambda i: (i, 0)),
                pl.BlockSpec(a1.shape, lambda i: (0, 0)),
                pl.BlockSpec(b1row.shape, lambda i: (0, 0)),
                pl.BlockSpec(d2.shape, lambda i: (0, 0)),
                pl.BlockSpec(b2row.shape, lambda i: (0, 0)),
                pl.BlockSpec(a3.shape, lambda i: (0, 0)),
                pl.BlockSpec(b3row.shape, lambda i: (0, 0)),
            ],
            out_specs=pl.BlockSpec((R, W * C_OUT), lambda i: (i, 0)),
        ),
        compiler_params=pltpu.CompilerParams(
            dimension_semantics=("parallel",),
            vmem_limit_bytes=32 * 1024 * 1024),
    )(xrows, a1, b1row, d2, b2row, a3, b3row)

    out_nhwc = out_rows.reshape(B, H, W, C_OUT)
    return jnp.transpose(out_nhwc, (0, 3, 1, 2))


def init_params(key, c_in, c_out, c_hidden):
    """Deterministic parameter init. Weights stored as (kh, kw, in, out)."""
    k1, k2, k3, k4 = jax.random.split(key, 4)
    w1 = jax.random.normal(k1, (3, 3, c_in, c_hidden), jnp.float32) * 0.1
    b1 = jax.random.normal(k2, (c_hidden,), jnp.float32) * 0.1
    w2 = jax.random.normal(k3, (c_hidden, c_hidden), jnp.float32) * 0.1
    b2 = jax.random.normal(k4, (c_hidden,), jnp.float32) * 0.1
    # Last layer is zero-initialized in the module (affine-coupling identity).
    w3 = jnp.zeros((3, 3, c_hidden, c_out), jnp.float32)
    b3 = jnp.zeros((c_out,), jnp.float32)
    return (w1, b1, w2, b2, w3, b3)


def reference_forward(x_nchw, params):
    """Pure-JAX (lax.conv) reference in NCHW, mirroring torch semantics."""
    w1, b1, w2, b2, w3, b3 = params

    def conv(x, w_hwio, b, pad):
        w_oihw = jnp.transpose(w_hwio, (3, 2, 0, 1))
        y = lax.conv_general_dilated(
            x, w_oihw, window_strides=(1, 1),
            padding=[(pad, pad), (pad, pad)],
            dimension_numbers=("NCHW", "OIHW", "NCHW"))
        return y + b[None, :, None, None]

    h = jax.nn.relu(conv(x_nchw, w1, b1, pad=1))
    h = jax.nn.relu(conv(h, w2[None, None], b2, pad=0))
    return conv(h, w3, b3, pad=1)


if __name__ == "__main__":
    B, C_IN, H, W = 2, 4, 16, 16
    C_HIDDEN_FACTOR = 32
    C_OUT = 8

    key = jax.random.PRNGKey(0)
    kx, kp = jax.random.split(key)
    x = jax.random.normal(kx, (B, C_IN, H, W), jnp.float32)

    # Module-faithful parameters (last conv zero-initialized); weight prep is
    # done once, outside the jitted forward.
    params = init_params(kp, C_IN, C_OUT, C_HIDDEN_FACTOR)
    prepared = prepare_weights(params, W)
    out = jax.block_until_ready(simple_conv_net_forward(x, prepared))
    ref = reference_forward(x, params)
    assert out.shape == (B, C_OUT, H, W), out.shape
    # bf16 matmul operands with f32 accumulation -> relaxed tolerance.
    assert jnp.allclose(out, ref, atol=5e-2, rtol=5e-2), "mismatch (zero w3)"

    # Exercise the conv3 path (identically zero under module init) with random
    # weights.
    kv1, kv2 = jax.random.split(jax.random.PRNGKey(1))
    w1, b1, w2, b2, _, _ = params
    w3r = jax.random.normal(kv1, (3, 3, C_HIDDEN_FACTOR, C_OUT), jnp.float32) * 0.1
    b3r = jax.random.normal(kv2, (C_OUT,), jnp.float32) * 0.1
    params_r = (w1, b1, w2, b2, w3r, b3r)
    prepared_r = prepare_weights(params_r, W)
    out_r = jax.block_until_ready(simple_conv_net_forward(x, prepared_r))
    ref_r = reference_forward(x, params_r)
    max_err = float(jnp.max(jnp.abs(out_r - ref_r)))
    assert jnp.allclose(out_r, ref_r, atol=5e-2, rtol=5e-2), f"max err {max_err}"

    # Multiple images inside ONE batch block (B=4 -> R=64 rows in a single
    # tile) so the per-image y-boundary masks of the row shifts are exercised.
    x4 = jax.random.normal(jax.random.PRNGKey(2), (4, C_IN, H, W), jnp.float32)
    out4 = jax.block_until_ready(simple_conv_net_forward(x4, prepared_r))
    ref4 = reference_forward(x4, params_r)
    max_err4 = float(jnp.max(jnp.abs(out4 - ref4)))
    assert jnp.allclose(out4, ref4, atol=5e-2, rtol=5e-2), f"max err {max_err4}"

    print("KERNEL_OK")
</pallas_src>

<mosaic_0001>
module attributes {stable_mosaic.version = 11 : i64} {
  func.func @_conv_rows_kernel(%arg0: i32, %arg1: memref<32x64xf32, #tpu.memory_space<vmem>>, %arg2: memref<192x512xbf16, #tpu.memory_space<vmem>>, %arg3: memref<1x512xf32, #tpu.memory_space<vmem>>, %arg4: memref<512x512xbf16, #tpu.memory_space<vmem>>, %arg5: memref<1x512xf32, #tpu.memory_space<vmem>>, %arg6: memref<1536x128xbf16, #tpu.memory_space<vmem>>, %arg7: memref<1x128xf32, #tpu.memory_space<vmem>>, %arg8: memref<32x128xf32, #tpu.memory_space<vmem>>) attributes {dimension_semantics = [#tpu.dimension_semantics<parallel>], iteration_bounds = array<i64: 1>, scalar_prefetch = 0 : i64, scratch_operands = 0 : i64, tpu.core_type = #tpu.core_type<tc>, window_params = [{transform_indices = @transform_0, window_bounds = array<i64: 32, 64>}, {pipeline_mode = #tpu.pipeline_mode<synchronous>, transform_indices = @transform_1, window_bounds = array<i64: 192, 512>}, {pipeline_mode = #tpu.pipeline_mode<synchronous>, transform_indices = @transform_2, window_bounds = array<i64: 1, 512>}, {pipeline_mode = #tpu.pipeline_mode<synchronous>, transform_indices = @transform_3, window_bounds = array<i64: 512, 512>}, {pipeline_mode = #tpu.pipeline_mode<synchronous>, transform_indices = @transform_4, window_bounds = array<i64: 1, 512>}, {pipeline_mode = #tpu.pipeline_mode<synchronous>, transform_indices = @transform_5, window_bounds = array<i64: 1536, 128>}, {pipeline_mode = #tpu.pipeline_mode<synchronous>, transform_indices = @transform_6, window_bounds = array<i64: 1, 128>}, {transform_indices = @transform_7, window_bounds = array<i64: 32, 128>}]} {
    %0 = tpu.iota {dimensions = array<i32: 0>} : vector<32x1xi32>
    %c16_i32 = arith.constant 16 : i32
    %c0_i32 = arith.constant 0 : i32
    %1 = arith.cmpi eq, %c16_i32, %c0_i32 : i32
    %c1_i32 = arith.constant 1 : i32
    %2 = arith.select %1, %c1_i32, %c16_i32 : i32
    %3 = vector.broadcast %2 : i32 to vector<32x1xi32>
    %4 = arith.remsi %0, %3 : vector<32x1xi32>
    %c0_i32_0 = arith.constant 0 : i32
    %5 = vector.broadcast %c0_i32_0 : i32 to vector<32x1xi32>
    %6 = arith.cmpi ne, %4, %5 : vector<32x1xi32>
    %c0_i32_1 = arith.constant 0 : i32
    %7 = vector.broadcast %c0_i32_1 : i32 to vector<32x1xi32>
    %8 = arith.cmpi slt, %4, %7 : vector<32x1xi32>
    %c0_i32_2 = arith.constant 0 : i32
    %9 = arith.cmpi slt, %2, %c0_i32_2 : i32
    %10 = vector.broadcast %9 : i1 to vector<32x1xi1>
    %11 = vector.broadcast %10 : vector<32x1xi1> to vector<32x1xi1>
    %12 = arith.xori %8, %11 : vector<32x1xi1>
    %13 = arith.andi %12, %6 : vector<32x1xi1>
    %14 = vector.broadcast %2 : i32 to vector<32x1xi32>
    %15 = arith.addi %4, %14 : vector<32x1xi32>
    %16 = arith.select %13, %15, %4 : vector<32x1xi1>, vector<32x1xi32>
    %c0_i32_3 = arith.constant 0 : i32
    %17 = vector.broadcast %c0_i32_3 : i32 to vector<32x1xi32>
    %18 = arith.cmpi ne, %16, %17 : vector<32x1xi32>
    %19 = arith.extui %18 : vector<32x1xi1> to vector<32x1xi32>
    %20 = arith.sitofp %19 : vector<32x1xi32> to vector<32x1xf32>
    %c15_i32 = arith.constant 15 : i32
    %21 = vector.broadcast %c15_i32 : i32 to vector<32x1xi32>
    %22 = arith.cmpi ne, %16, %21 : vector<32x1xi32>
    %23 = arith.extui %22 : vector<32x1xi1> to vector<32x1xi32>
    %24 = arith.sitofp %23 : vector<32x1xi32> to vector<32x1xf32>
    %c0 = arith.constant 0 : index
    %c0_4 = arith.constant 0 : index
    %25 = vector.load %arg1[%c0, %c0_4] : memref<32x64xf32, #tpu.memory_space<vmem>>, vector<32x64xf32>
    %c1_i32_5 = arith.constant 1 : i32
    %26 = tpu.dynamic_rotate %25 by %c1_i32_5 dim 0 : vector<32x64xf32>, i32 -> vector<32x64xf32>
    %27 = vector.broadcast %20 : vector<32x1xf32> to vector<32x64xf32>
    %28 = arith.mulf %26, %27 : vector<32x64xf32>
    %c31_i32 = arith.constant 31 : i32
    %29 = tpu.dynamic_rotate %25 by %c31_i32 dim 0 : vector<32x64xf32>, i32 -> vector<32x64xf32>
    %30 = vector.broadcast %24 : vector<32x1xf32> to vector<32x64xf32>
    %31 = arith.mulf %29, %30 : vector<32x64xf32>
    %32 = tpu.concatenate %28, %25, %31 in 1 : vector<32x64xf32>, vector<32x64xf32>, vector<32x64xf32> -> vector<32x192xf32>
    %33 = arith.truncf %32 : vector<32x192xf32> to vector<32x192xbf16>
    %c0_6 = arith.constant 0 : index
    %c0_7 = arith.constant 0 : index
    %34 = vector.load %arg2[%c0_6, %c0_7] : memref<192x512xbf16, #tpu.memory_space<vmem>>, vector<192x512xbf16>
    %cst = arith.constant dense<0.000000e+00> : vector<32x512xf32>
    %35 = tpu.matmul %33, %34, %cst {dimension_numbers = #tpu.dot_dimension_numbers<[1], [0], [0], [1], [0, 0, 1, 1], [], []>} : vector<32x192xbf16>, vector<192x512xbf16>, vector<32x512xf32> -> vector<32x512xf32>
    %c0_8 = arith.constant 0 : index
    %c0_9 = arith.constant 0 : index
    %36 = vector.load %arg3[%c0_8, %c0_9] : memref<1x512xf32, #tpu.memory_space<vmem>>, vector<1x512xf32>
    %37 = vector.broadcast %36 : vector<1x512xf32> to vector<32x512xf32>
    %38 = arith.addf %35, %37 : vector<32x512xf32>
    %cst_10 = arith.constant 0.000000e+00 : f32
    %39 = vector.broadcast %cst_10 : f32 to vector<32x512xf32>
    %40 = arith.maximumf %38, %39 : vector<32x512xf32>
    %41 = arith.truncf %40 : vector<32x512xf32> to vector<32x512xbf16>
    %c0_11 = arith.constant 0 : index
    %c0_12 = arith.constant 0 : index
    %42 = vector.load %arg4[%c0_11, %c0_12] : memref<512x512xbf16, #tpu.memory_space<vmem>>, vector<512x512xbf16>
    %cst_13 = arith.constant dense<0.000000e+00> : vector<32x512xf32>
    %43 = tpu.matmul %41, %42, %cst_13 {dimension_numbers = #tpu.dot_dimension_numbers<[1], [0], [0], [1], [0, 0, 1, 1], [], []>} : vector<32x512xbf16>, vector<512x512xbf16>, vector<32x512xf32> -> vector<32x512xf32>
    %c0_14 = arith.constant 0 : index
    %c0_15 = arith.constant 0 : index
    %44 = vector.load %arg5[%c0_14, %c0_15] : memref<1x512xf32, #tpu.memory_space<vmem>>, vector<1x512xf32>
    %45 = vector.broadcast %44 : vector<1x512xf32> to vector<32x512xf32>
    %46 = arith.addf %43, %45 : vector<32x512xf32>
    %cst_16 = arith.constant 0.000000e+00 : f32
    %47 = vector.broadcast %cst_16 : f32 to vector<32x512xf32>
    %48 = arith.maximumf %46, %47 : vector<32x512xf32>
    %c1_i32_17 = arith.constant 1 : i32
    %49 = tpu.dynamic_rotate %48 by %c1_i32_17 dim 0 : vector<32x512xf32>, i32 -> vector<32x512xf32>
    %50 = vector.broadcast %20 : vector<32x1xf32> to vector<32x512xf32>
    %51 = arith.mulf %49, %50 : vector<32x512xf32>
    %c31_i32_18 = arith.constant 31 : i32
    %52 = tpu.dynamic_rotate %48 by %c31_i32_18 dim 0 : vector<32x512xf32>, i32 -> vector<32x512xf32>
    %53 = vector.broadcast %24 : vector<32x1xf32> to vector<32x512xf32>
    %54 = arith.mulf %52, %53 : vector<32x512xf32>
    %55 = tpu.concatenate %51, %48, %54 in 1 : vector<32x512xf32>, vector<32x512xf32>, vector<32x512xf32> -> vector<32x1536xf32>
    %56 = arith.truncf %55 : vector<32x1536xf32> to vector<32x1536xbf16>
    %c0_19 = arith.constant 0 : index
    %c0_20 = arith.constant 0 : index
    %57 = vector.load %arg6[%c0_19, %c0_20] : memref<1536x128xbf16, #tpu.memory_space<vmem>>, vector<1536x128xbf16>
    %cst_21 = arith.constant dense<0.000000e+00> : vector<32x128xf32>
    %58 = tpu.matmul %56, %57, %cst_21 {dimension_numbers = #tpu.dot_dimension_numbers<[1], [0], [0], [1], [0, 0, 1, 1], [], []>} : vector<32x1536xbf16>, vector<1536x128xbf16>, vector<32x128xf32> -> vector<32x128xf32>
    %c0_22 = arith.constant 0 : index
    %c0_23 = arith.constant 0 : index
    %59 = vector.load %arg7[%c0_22, %c0_23] : memref<1x128xf32, #tpu.memory_space<vmem>>, vector<1x128xf32>
    %60 = vector.broadcast %59 : vector<1x128xf32> to vector<32x128xf32>
    %61 = arith.addf %58, %60 : vector<32x128xf32>
    %c0_24 = arith.constant 0 : index
    %c0_25 = arith.constant 0 : index
    %62 = vector.load %arg8[%c0_24, %c0_25] : memref<32x128xf32, #tpu.memory_space<vmem>>, vector<32x128xf32>
    tpu.vector_store %arg8[%c0_24, %c0_25], %61 {strides = array<i32>} : memref<32x128xf32, #tpu.memory_space<vmem>>, vector<32x128xf32>,
    return
  }
  func.func @transform_0(%arg0: i32) -> (i32, i32) {
    %c0_i32 = arith.constant 0 : i32
    %c0_i32_0 = arith.constant 0 : i32
    return %arg0, %c0_i32 : i32, i32
  }
  func.func @transform_1(%arg0: i32) -> (i32, i32) {
    %c0_i32 = arith.constant 0 : i32
    %c0_i32_0 = arith.constant 0 : i32
    %c0_i32_1 = arith.constant 0 : i32
    return %c0_i32, %c0_i32_0 : i32, i32
  }
  func.func @transform_2(%arg0: i32) -> (i32, i32) {
    %c0_i32 = arith.constant 0 : i32
    %c0_i32_0 = arith.constant 0 : i32
    %c0_i32_1 = arith.constant 0 : i32
    return %c0_i32, %c0_i32_0 : i32, i32
  }
  func.func @transform_3(%arg0: i32) -> (i32, i32) {
    %c0_i32 = arith.constant 0 : i32
    %c0_i32_0 = arith.constant 0 : i32
    %c0_i32_1 = arith.constant 0 : i32
    return %c0_i32, %c0_i32_0 : i32, i32
  }
  func.func @transform_4(%arg0: i32) -> (i32, i32) {
    %c0_i32 = arith.constant 0 : i32
    %c0_i32_0 = arith.constant 0 : i32
    %c0_i32_1 = arith.constant 0 : i32
    return %c0_i32, %c0_i32_0 : i32, i32
  }
  func.func @transform_5(%arg0: i32) -> (i32, i32) {
    %c0_i32 = arith.constant 0 : i32
    %c0_i32_0 = arith.constant 0 : i32
    %c0_i32_1 = arith.constant 0 : i32
    return %c0_i32, %c0_i32_0 : i32, i32
  }
  func.func @transform_6(%arg0: i32) -> (i32, i32) {
    %c0_i32 = arith.constant 0 : i32
    %c0_i32_0 = arith.constant 0 : i32
    %c0_i32_1 = arith.constant 0 : i32
    return %c0_i32, %c0_i32_0 : i32, i32
  }
  func.func @transform_7(%arg0: i32) -> (i32, i32) {
    %c0_i32 = arith.constant 0 : i32
    %c0_i32_0 = arith.constant 0 : i32
    return %arg0, %c0_i32 : i32, i32
  }
}

</mosaic_0001>

<llo_original>
// kernel: simple_conv_net_forward.1
$region0: #{simple_conv_net_forward.1}
  #allocation0 [shape = 'u32[]', space=smem, size = 0x4, offset = 0x4, fixed_abs, tag = 'smem constant byte address 0x4 - core index']
  #allocation1 [shape = 'u32[144,128]{1,0:T(1,128)}', space=vmem, size = 0x12000, scoped, tag = 'internal scratch']
  %s0 = inlined_call_operand.vmem [shape: f32[32,64], index: 0, kind: input, shape index: {}]
  %s1 = inlined_call_operand.vmem [shape: bf16[192,512], index: 1, kind: input, shape index: {}]
  %s2 = inlined_call_operand.vmem [shape: f32[1,512], index: 2, kind: input, shape index: {}]
  %s3 = inlined_call_operand.hbm [shape: bf16[512,512], index: 3, kind: input, shape index: {}]
  %s4 = inlined_call_operand.vmem [shape: f32[1,512], index: 4, kind: input, shape index: {}]
  %s5 = inlined_call_operand.hbm [shape: bf16[1536,128], index: 5, kind: input, shape index: {}]
  %s6 = inlined_call_operand.vmem [shape: f32[1,128], index: 6, kind: input, shape index: {}]
  %s7 = inlined_call_operand.vmem [shape: f32[32,128], index: 7, kind: output, shape index: {}]
  %s8 = sld [smem:[#allocation0]]
  $region46: #{simple_conv_net_forward.1} parent=0
    _
  %s10 = ssub.s32 1, %s8
  %s11 = scalar_select 0, %s10, %s8
  $region1: #{simple_conv_net_forward.1} parent=0
    #allocation2 [shape = 'u8[524288]{0}', space=vmem, size = 0x80000, scoped, tag = 'input window, operand 3, single buffered']
    #allocation3 [shape = 's32[1]{0}', space=sflag, size = 0x4, scoped, tag = 'scoped memory for simple_conv_net_forward.1']
    #allocation4 [shape = 'u8[393216]{0}', space=vmem, size = 0x60000, scoped, tag = 'input window, operand 5, single buffered']
    #allocation5 [shape = 's32[1]{0}', space=sflag, size = 0x4, scoped, tag = 'scoped memory for simple_conv_net_forward.1']
    %12 = vsyncpa [#allocation3], 0
    %13 = vsyncpa [#allocation5], 0
    // Predicated region
    $region2: #{simple_conv_net_forward.1} parent=1 // pred_check
      _
    $region3: #{simple_conv_net_forward.1} parent=1 // pred_check_branch
      %15 = sbr.rel (0) target = $region5
    $region4: #{simple_conv_net_forward.1} parent=1 // pred_region
      _
    $region5: #{simple_conv_net_forward.1} parent=1 // pred_fallthru
      _
    // Predicated region
    $region6: #{simple_conv_net_forward.1} parent=1 // pred_check
      _
    $region7: #{simple_conv_net_forward.1} parent=1 // pred_check_branch
      %17 = sbr.rel (0) target = $region9
    $region8: #{simple_conv_net_forward.1} parent=1 // pred_region
      _
    $region9: #{simple_conv_net_forward.1} parent=1 // pred_fallthru
      _
    // Predicated region
    $region10: #{simple_conv_net_forward.1} parent=1 // pred_check
      _
    $region11: #{simple_conv_net_forward.1} parent=1 // pred_check_branch
      %19 = sbr.rel (0) target = $region13
    $region12: #{simple_conv_net_forward.1} parent=1 // pred_region
      _
    $region13: #{simple_conv_net_forward.1} parent=1 // pred_fallthru
      _
    // Predicated region
    $region14: #{simple_conv_net_forward.1} parent=1 // pred_check
      _
    $region15: #{simple_conv_net_forward.1} parent=1 // pred_check_branch
      %21 = sbr.rel (0) target = $region17
    $region16: #{simple_conv_net_forward.1} parent=1 // pred_region
      %s23 = ssub.s32 16384, 16384
      %24 = vsyncadd [#allocation3], %s23
      %s25 = sshll.u32 [#allocation2], 4
      %s26 = int_to_ptr.vmem [resolvable:$true] %s25
      %31 = dma.hbm_to_vmem [thread:$0]  %s3, 16384, %s26, [#allocation3], 256, 256, 16
    $region17: #{simple_conv_net_forward.1} parent=1 // pred_fallthru
      _
    // Predicated region
    $region18: #{simple_conv_net_forward.1} parent=1 // pred_check
      _
    $region19: #{simple_conv_net_forward.1} parent=1 // pred_check_branch
      %33 = sbr.rel (0) target = $region21
    $region20: #{simple_conv_net_forward.1} parent=1 // pred_region
      _
    $region21: #{simple_conv_net_forward.1} parent=1 // pred_fallthru
      _
    // Predicated region
    $region22: #{simple_conv_net_forward.1} parent=1 // pred_check
      _
    $region23: #{simple_conv_net_forward.1} parent=1 // pred_check_branch
      %35 = sbr.rel (0) target = $region25
    $region24: #{simple_conv_net_forward.1} parent=1 // pred_region
      %s37 = ssub.s32 12288, 12288
      %38 = vsyncadd [#allocation5], %s37
      %s39 = sshll.u32 [#allocation4], 4
      %s40 = int_to_ptr.vmem [resolvable:$true] %s39
      %45 = dma.hbm_to_vmem [thread:$0]  %s5, 12288, %s40, [#allocation5], 64, 64, 4
    $region25: #{simple_conv_net_forward.1} parent=1 // pred_fallthru
      _
    // Predicated region
    $region26: #{simple_conv_net_forward.1} parent=1 // pred_check
      _
    $region27: #{simple_conv_net_forward.1} parent=1 // pred_check_branch
      %47 = sbr.rel (0) target = $region29
    $region28: #{simple_conv_net_forward.1} parent=1 // pred_region
      _
    $region29: #{simple_conv_net_forward.1} parent=1 // pred_fallthru
      _
    // Predicated region
    $region30: #{simple_conv_net_forward.1} parent=1 // pred_check
      _
    $region31: #{simple_conv_net_forward.1} parent=1 // pred_check_branch
      %49 = sbr.rel (0) target = $region33
    $region32: #{simple_conv_net_forward.1} parent=1 // pred_region
      %50 = dma.done [#allocation3], 16384
    $region33: #{simple_conv_net_forward.1} parent=1 // pred_fallthru
      _
    // Predicated region
    $region34: #{simple_conv_net_forward.1} parent=1 // pred_check
      _
    $region35: #{simple_conv_net_forward.1} parent=1 // pred_check_branch
      %52 = sbr.rel (0) target = $region37
    $region36: #{simple_conv_net_forward.1} parent=1 // pred_region
      %53 = dma.done [#allocation5], 12288
    $region37: #{simple_conv_net_forward.1} parent=1 // pred_fallthru
      _
    %v55 = vlaneseq
    %v56 = vshrl.u32 %v55, 7
    %v57 = vadd.s32 %v56, 8
    %v58 = vadd.s32 %v56, 16
    %v59 = vadd.s32 %v56, 24
    %vm60 = vcmp.lt.s32.totalorder %v56, 0
    %v61 = vsub.s32 0, %v56
    %v62 = vsel %vm60, %v61, %v56
    %v63 = vshrl.u32 %v62, 4
    %v64 = vand.u32 %v62, 15
    %v65 = vsub.s32 0, %v64
    %v66 = vsel %vm60, %v65, %v64
    %vm67 = vcmp.lt.s32.totalorder %v57, 0
    %v68 = vsub.s32 0, %v57
    %v69 = vsel %vm67, %v68, %v57
    %v70 = vshrl.u32 %v69, 4
    %v71 = vand.u32 %v69, 15
    %v72 = vsub.s32 0, %v71
    %v73 = vsel %vm67, %v72, %v71
    %vm74 = vcmp.lt.s32.totalorder %v58, 0
    %v75 = vsub.s32 0, %v58
    %v76 = vsel %vm74, %v75, %v58
    %v77 = vshrl.u32 %v76, 4
    %v78 = vand.u32 %v76, 15
    %v79 = vsub.s32 0, %v78
    %v80 = vsel %vm74, %v79, %v78
    %vm81 = vcmp.lt.s32.totalorder %v59, 0
    %v82 = vsub.s32 0, %v59
    %v83 = vsel %vm81, %v82, %v59
    %v84 = vshrl.u32 %v83, 4
    %v85 = vand.u32 %v83, 15
    %v86 = vsub.s32 0, %v85
    %v87 = vsel %vm81, %v86, %v85
    %vm88 = vcmp.ne.s32.totalorder %v66, 0
    %vm89 = vcmp.ne.s32.totalorder %v73, 0
    %vm90 = vcmp.ne.s32.totalorder %v80, 0
    %vm91 = vcmp.ne.s32.totalorder %v87, 0
    %vm92 = vcmp.lt.s32.totalorder %v66, 0
    %vm93 = vcmp.lt.s32.totalorder %v73, 0
    %vm94 = vcmp.lt.s32.totalorder %v80, 0
    %vm95 = vcmp.lt.s32.totalorder %v87, 0
    %vm96 = vmand %vm92, %vm88
    %vm97 = vmand %vm93, %vm89
    %vm98 = vmand %vm94, %vm90
    %vm99 = vmand %vm95, %vm91
    %v100 = vadd.s32 %v66, 16
    %v101 = vadd.s32 %v73, 16
    %v102 = vadd.s32 %v80, 16
    %v103 = vadd.s32 %v87, 16
    %v104 = vsel %vm96, %v100, %v66
    %v105 = vsel %vm97, %v101, %v73
    %v106 = vsel %vm98, %v102, %v80
    %v107 = vsel %vm99, %v103, %v87
    %vm108 = vcmp.ne.s32.totalorder %v104, 0
    %vm109 = vcmp.ne.s32.totalorder %v105, 0
    %vm110 = vcmp.ne.s32.totalorder %v106, 0
    %vm111 = vcmp.ne.s32.totalorder %v107, 0
    %v112 = vsel %vm108, 1, 0
    %v113 = vsel %vm109, 1, 0
    %v114 = vsel %vm110, 1, 0
    %v115 = vsel %vm111, 1, 0
    %v116 = vcvt.s32.f32 %v112
    %v117 = vcvt.s32.f32 %v113
    %v118 = vcvt.s32.f32 %v114
    %v119 = vcvt.s32.f32 %v115
    %vm120 = vcmp.ne.s32.totalorder %v104, 15
    %vm121 = vcmp.ne.s32.totalorder %v105, 15
    %vm122 = vcmp.ne.s32.totalorder %v106, 15
    %vm123 = vcmp.ne.s32.totalorder %v107, 15
    %v124 = vsel %vm120, 1, 0
    %v125 = vsel %vm121, 1, 0
    %v126 = vsel %vm122, 1, 0
    %v127 = vsel %vm123, 1, 0
    %v128 = vcvt.s32.f32 %v124
    %v129 = vcvt.s32.f32 %v125
    %v130 = vcvt.s32.f32 %v126
    %v131 = vcvt.s32.f32 %v127
    %v132 = vld [vmem:[%s0] sm:$0xff]
    %v133 = vld [vmem:[%s0 + $0x8] sm:$0xff]
    %v134 = vld [vmem:[%s0 + $0x10] sm:$0xff]
    %v135 = vld [vmem:[%s0 + $0x18] sm:$0xff]
    %v136 = vrot.slane %v132, 7
    %v137 = vrot.slane %v133, 7
    %v138 = vrot.slane %v134, 7
    %v139 = vrot.slane %v135, 7
    %vm140 = vcmp.lt.s32.totalorder %v56, 1
    %v141 = vsel %vm140, %v138, %v139
    %v142 = vsel %vm140, %v137, %v138
    %v143 = vsel %vm140, %v136, %v137
    %v144 = vsel %vm140, %v139, %v136
    %v145 = vmul.f32 %v144, %v116
    %v146 = vmul.f32 %v143, %v117
    %v147 = vmul.f32 %v142, %v118
    %v148 = vmul.f32 %v141, %v119
    %v149 = vrot.slane %v132, 1
    %v150 = vrot.slane %v133, 1
    %v151 = vrot.slane %v134, 1
    %v152 = vrot.slane %v135, 1
    %vm153 = vcmp.lt.s32.totalorder %v56, 7
    %v154 = vsel %vm153, %v151, %v152
    %v155 = vsel %vm153, %v150, %v151
    %v156 = vsel %vm153, %v149, %v150
    %v157 = vsel %vm153, %v152, %v149
    %v158 = vmul.f32 %v156, %v128
    %v159 = vmul.f32 %v155, %v129
    %v160 = vmul.f32 %v154, %v130
    %v161 = vmul.f32 %v157, %v131
    %166 = vrot.lane.b32.xlu0 %v132, 64
    %v167 = vpop.permute.xlu0 %166
    %168 = vrot.lane.b32.xlu0 %v133, 64
    %v169 = vpop.permute.xlu0 %168
    %170 = vrot.lane.b32.xlu0 %v134, 64
    %v171 = vpop.permute.xlu0 %170
    %172 = vrot.lane.b32.xlu0 %v135, 64
    %v173 = vpop.permute.xlu0 %172
    %vm178 = vcmask 523264
    %v179 = vsel %vm178, %v145, %v167
    %v180 = vsel %vm178, %v146, %v169
    %v181 = vsel %vm178, %v147, %v171
    %v182 = vsel %vm178, %v148, %v173
    %v183 = vpack.c.bf16 %v180, %v179
    %v184 = vpack.c.bf16 %v159, %v158
    %v185 = vpack.c.bf16 %v182, %v181
    %v186 = vpack.c.bf16 %v161, %v160
    %v187 = vld [vmem:[%s1] sm:$0xff]
    %v188 = vld [vmem:[%s1 + $0x8] sm:$0xff]
    %v189 = vld [vmem:[%s1 + $0x10] sm:$0xff]
    %v190 = vld [vmem:[%s1 + $0x18] sm:$0xff]
    %v191 = vld [vmem:[%s1 + $0x20] sm:$0xff]
    %v192 = vld [vmem:[%s1 + $0x28] sm:$0xff]
    %v193 = vld [vmem:[%s1 + $0x30] sm:$0xff]
    %v194 = vld [vmem:[%s1 + $0x38] sm:$0xff]
    %v195 = vld [vmem:[%s1 + $0x40] sm:$0xff]
    %v196 = vld [vmem:[%s1 + $0x48] sm:$0xff]
    %v197 = vld [vmem:[%s1 + $0x50] sm:$0xff]
    %v198 = vld [vmem:[%s1 + $0x58] sm:$0xff]
    %v199 = vld [vmem:[%s1 + $0x60] sm:$0xff]
    %v200 = vld [vmem:[%s1 + $0x68] sm:$0xff]
    %v201 = vld [vmem:[%s1 + $0x70] sm:$0xff]
    %v202 = vld [vmem:[%s1 + $0x78] sm:$0xff]
    %v203 = vld [vmem:[%s1 + $0x80] sm:$0xff]
    %v204 = vld [vmem:[%s1 + $0x88] sm:$0xff]
    %v205 = vld [vmem:[%s1 + $0x90] sm:$0xff]
    %v206 = vld [vmem:[%s1 + $0x98] sm:$0xff]
    %v207 = vld [vmem:[%s1 + $0xa0] sm:$0xff]
    %v208 = vld [vmem:[%s1 + $0xa8] sm:$0xff]
    %v209 = vld [vmem:[%s1 + $0xb0] sm:$0xff]
    %v210 = vld [vmem:[%s1 + $0xb8] sm:$0xff]
    %v211 = vld [vmem:[%s1 + $0xc0] sm:$0xff]
    %v212 = vld [vmem:[%s1 + $0xc8] sm:$0xff]
    %v213 = vld [vmem:[%s1 + $0xd0] sm:$0xff]
    %v214 = vld [vmem:[%s1 + $0xd8] sm:$0xff]
    %v215 = vld [vmem:[%s1 + $0xe0] sm:$0xff]
    %v216 = vld [vmem:[%s1 + $0xe8] sm:$0xff]
    %v217 = vld [vmem:[%s1 + $0xf0] sm:$0xff]
    %v218 = vld [vmem:[%s1 + $0xf8] sm:$0xff]
    %v219 = vld [vmem:[%s1 + $0x100] sm:$0xff]
    %v220 = vld [vmem:[%s1 + $0x108] sm:$0xff]
    %v221 = vld [vmem:[%s1 + $0x110] sm:$0xff]
    %v222 = vld [vmem:[%s1 + $0x118] sm:$0xff]
    %v223 = vld [vmem:[%s1 + $0x120] sm:$0xff]
    %v224 = vld [vmem:[%s1 + $0x128] sm:$0xff]
    %v225 = vld [vmem:[%s1 + $0x130] sm:$0xff]
    %v226 = vld [vmem:[%s1 + $0x138] sm:$0xff]
    %v227 = vld [vmem:[%s1 + $0x140] sm:$0xff]
    %v228 = vld [vmem:[%s1 + $0x148] sm:$0xff]
    %v229 = vld [vmem:[%s1 + $0x150] sm:$0xff]
    %v230 = vld [vmem:[%s1 + $0x158] sm:$0xff]
    %v231 = vld [vmem:[%s1 + $0x160] sm:$0xff]
    %v232 = vld [vmem:[%s1 + $0x168] sm:$0xff]
    %v233 = vld [vmem:[%s1 + $0x170] sm:$0xff]
    %v234 = vld [vmem:[%s1 + $0x178] sm:$0xff]
    %v235 = vld [vmem:[%s2] sm:$0xf]
    %v237 = vlaneseq
    %v238 = vshrl.u32 %v237, 7
    %v239 = vsub.s32 0, %v238
    %v240 = vrot.slane %v235, %v239
    %v241 = vlaneseq
    %v242 = vshrl.u32 %v241, 7
    %v243 = vsub.s32 1, %v242
    %v244 = vrot.slane %v235, %v243
    %v245 = vlaneseq
    %v246 = vshrl.u32 %v245, 7
    %v247 = vsub.s32 2, %v246
    %v248 = vrot.slane %v235, %v247
    %v249 = vlaneseq
    %v250 = vshrl.u32 %v249, 7
    %v251 = vsub.s32 3, %v250
    %v252 = vrot.slane %v235, %v251
    %v305 = vunpack.c.l.b16 %v187
    %v306 = vunpack.c.h.b16 %v187
    %v307 = vunpack.c.l.b16 %v188
    %v308 = vunpack.c.h.b16 %v188
    %v309 = vunpack.c.l.b16 %v189
    %v310 = vunpack.c.h.b16 %v189
    %v311 = vunpack.c.l.b16 %v190
    %v312 = vunpack.c.h.b16 %v190
    %v313 = vunpack.c.l.b16 %v191
    %v314 = vunpack.c.h.b16 %v191
    %v315 = vunpack.c.l.b16 %v192
    %v316 = vunpack.c.h.b16 %v192
    %v317 = vunpack.c.l.b16 %v193
    %v318 = vunpack.c.h.b16 %v193
    %v319 = vunpack.c.l.b16 %v194
    %v320 = vunpack.c.h.b16 %v194
    %v321 = vunpack.c.l.b16 %v195
    %v322 = vunpack.c.h.b16 %v195
    %v323 = vunpack.c.l.b16 %v196
    %v324 = vunpack.c.h.b16 %v196
    %v325 = vunpack.c.l.b16 %v197
    %v326 = vunpack.c.h.b16 %v197
    %v327 = vunpack.c.l.b16 %v198
    %v328 = vunpack.c.h.b16 %v198
    %v329 = vunpack.c.l.b16 %v199
    %v330 = vunpack.c.h.b16 %v199
    %v331 = vunpack.c.l.b16 %v200
    %v332 = vunpack.c.h.b16 %v200
    %v333 = vunpack.c.l.b16 %v201
    %v334 = vunpack.c.h.b16 %v201
    %v335 = vunpack.c.l.b16 %v202
    %v336 = vunpack.c.h.b16 %v202
    %v337 = vunpack.c.l.b16 %v203
    %v338 = vunpack.c.h.b16 %v203
    %v339 = vunpack.c.l.b16 %v204
    %v340 = vunpack.c.h.b16 %v204
    %v341 = vunpack.c.l.b16 %v205
    %v342 = vunpack.c.h.b16 %v205
    %v343 = vunpack.c.l.b16 %v206
    %v344 = vunpack.c.h.b16 %v206
    %v345 = vunpack.c.l.b16 %v207
    %v346 = vunpack.c.h.b16 %v207
    %v347 = vunpack.c.l.b16 %v208
    %v348 = vunpack.c.h.b16 %v208
    %v349 = vunpack.c.l.b16 %v209
    %v350 = vunpack.c.h.b16 %v209
    %v351 = vunpack.c.l.b16 %v210
    %v352 = vunpack.c.h.b16 %v210
    %v353 = vunpack.c.l.b16 %v211
    %v354 = vunpack.c.h.b16 %v211
    %v355 = vunpack.c.l.b16 %v212
    %v356 = vunpack.c.h.b16 %v212
    %v357 = vunpack.c.l.b16 %v213
    %v358 = vunpack.c.h.b16 %v213
    %v359 = vunpack.c.l.b16 %v214
    %v360 = vunpack.c.h.b16 %v214
    %v361 = vunpack.c.l.b16 %v215
    %v362 = vunpack.c.h.b16 %v215
    %v363 = vunpack.c.l.b16 %v216
    %v364 = vunpack.c.h.b16 %v216
    %v365 = vunpack.c.l.b16 %v217
    %v366 = vunpack.c.h.b16 %v217
    %v367 = vunpack.c.l.b16 %v218
    %v368 = vunpack.c.h.b16 %v218
    %v369 = vunpack.c.l.b16 %v219
    %v370 = vunpack.c.h.b16 %v219
    %v371 = vunpack.c.l.b16 %v220
    %v372 = vunpack.c.h.b16 %v220
    %v373 = vunpack.c.l.b16 %v221
    %v374 = vunpack.c.h.b16 %v221
    %v375 = vunpack.c.l.b16 %v222
    %v376 = vunpack.c.h.b16 %v222
    %v377 = vunpack.c.l.b16 %v223
    %v378 = vunpack.c.h.b16 %v223
    %v379 = vunpack.c.l.b16 %v224
    %v380 = vunpack.c.h.b16 %v224
    %v381 = vunpack.c.l.b16 %v225
    %v382 = vunpack.c.h.b16 %v225
    %v383 = vunpack.c.l.b16 %v226
    %v384 = vunpack.c.h.b16 %v226
    %v385 = vunpack.c.l.b16 %v227
    %v386 = vunpack.c.h.b16 %v227
    %v387 = vunpack.c.l.b16 %v228
    %v388 = vunpack.c.h.b16 %v228
    %v389 = vunpack.c.l.b16 %v229
    %v390 = vunpack.c.h.b16 %v229
    %v391 = vunpack.c.l.b16 %v230
    %v392 = vunpack.c.h.b16 %v230
    %v393 = vunpack.c.l.b16 %v231
    %v394 = vunpack.c.h.b16 %v231
    %v395 = vunpack.c.l.b16 %v232
    %v396 = vunpack.c.h.b16 %v232
    %v397 = vunpack.c.l.b16 %v233
    %v398 = vunpack.c.h.b16 %v233
    %v399 = vunpack.c.l.b16 %v234
    %v400 = vunpack.c.h.b16 %v234
    %v401 = vpack.c.b16 %v309, %v305
    %v402 = vpack.c.b16 %v310, %v306
    %v403 = vpack.c.b16 %v311, %v307
    %v404 = vpack.c.b16 %v312, %v308
    %v405 = vpack.c.b16 %v317, %v313
    %v406 = vpack.c.b16 %v318, %v314
    %v407 = vpack.c.b16 %v319, %v315
    %v408 = vpack.c.b16 %v320, %v316
    %v409 = vpack.c.b16 %v325, %v321
    %v410 = vpack.c.b16 %v326, %v322
    %v411 = vpack.c.b16 %v327, %v323
    %v412 = vpack.c.b16 %v328, %v324
    %v413 = vpack.c.b16 %v333, %v329
    %v414 = vpack.c.b16 %v334, %v330
    %v415 = vpack.c.b16 %v335, %v331
    %v416 = vpack.c.b16 %v336, %v332
    %v417 = vpack.c.b16 %v341, %v337
    %v418 = vpack.c.b16 %v342, %v338
    %v419 = vpack.c.b16 %v343, %v339
    %v420 = vpack.c.b16 %v344, %v340
    %v421 = vpack.c.b16 %v349, %v345
    %v422 = vpack.c.b16 %v350, %v346
    %v423 = vpack.c.b16 %v351, %v347
    %v424 = vpack.c.b16 %v352, %v348
    %v425 = vpack.c.b16 %v357, %v353
    %v426 = vpack.c.b16 %v358, %v354
    %v427 = vpack.c.b16 %v359, %v355
    %v428 = vpack.c.b16 %v360, %v356
    %v429 = vpack.c.b16 %v365, %v361
    %v430 = vpack.c.b16 %v366, %v362
    %v431 = vpack.c.b16 %v367, %v363
    %v432 = vpack.c.b16 %v368, %v364
    %v433 = vpack.c.b16 %v373, %v369
    %v434 = vpack.c.b16 %v374, %v370
    %v435 = vpack.c.b16 %v375, %v371
    %v436 = vpack.c.b16 %v376, %v372
    %v437 = vpack.c.b16 %v381, %v377
    %v438 = vpack.c.b16 %v382, %v378
    %v439 = vpack.c.b16 %v383, %v379
    %v440 = vpack.c.b16 %v384, %v380
    %v441 = vpack.c.b16 %v389, %v385
    %v442 = vpack.c.b16 %v390, %v386
    %v443 = vpack.c.b16 %v391, %v387
    %v444 = vpack.c.b16 %v392, %v388
    %v445 = vpack.c.b16 %v397, %v393
    %v446 = vpack.c.b16 %v398, %v394
    %v447 = vpack.c.b16 %v399, %v395
    %v448 = vpack.c.b16 %v400, %v396
    %v498 = vsel %vm178, %v184, 0
    %v501 = vsel %vm178, %v186, 0
    %503 = vmatprep.subr.bf16.mxu0 %v402
    %504 = vmatpush1.bf16.msra.mxu0 %v401
    %505 = vmatprep.subr.bf16.mxu0 %v406
    %506 = vmatpush1.bf16.msra.mxu0 %v405
    %507 = vmatprep.subr.bf16.mxu0 %v410
    %508 = vmatpush1.bf16.msra.mxu0 %v409
    %509 = vmatprep.subr.bf16.mxu0 %v414
    %510 = vmatpush1.bf16.msra.mxu0 %v413
    %511 = vmatprep.subr.bf16.mxu0 %v418
    %512 = vmatpush1.bf16.msra.mxu0 %v417
    %513 = vmatprep.subr.bf16.mxu0 %v422
    %514 = vmatpush1.bf16.msra.mxu0 %v421
    %515 = vmatprep.subr.bf16.mxu0 %v426
    %516 = vmatpush1.bf16.msra.mxu0 %v425
    %517 = vmatprep.subr.bf16.mxu0 %v430
    %518 = vmatpush1.bf16.msra.mxu0 %v429
    %519 = vmatprep.subr.bf16.mxu0 %v434
    %520 = vmatpush1.bf16.msra.mxu0 %v433
    %521 = vmatprep.subr.bf16.mxu0 %v438
    %522 = vmatpush1.bf16.msra.mxu0 %v437
    %523 = vmatprep.subr.bf16.mxu0 %v442
    %524 = vmatpush1.bf16.msra.mxu0 %v441
    %525 = vmatprep.subr.bf16.mxu0 %v446
    %526 = vmatpush1.bf16.msra.mxu0 %v445
    %527 = vmatprep.subr.bf16.mxu0 0
    %528 = vmatpush1.bf16.msra.mxu0 0
    %529 = vmatprep.subr.bf16.mxu0 0
    %530 = vmatpush1.bf16.msra.mxu0 0
    %531 = vmatprep.subr.bf16.mxu0 0
    %532 = vmatpush1.bf16.msra.mxu0 0
    %533 = vmatprep.subr.bf16.mxu0 0
    %534 = vmatpush1.bf16.msra.mxu0 0
    %535 = vmatprep.mubr.bf16.mxu0 %v498
    %536 = vmatmul.mubr.bf16.gmra.mrb[0].mxu0 %v183
    %v537 = vpop.f32.mrb[0].mxu0
    %v538 = vadd.f32 %v240, %v537
    %v539 = vpop.f32.mrb[0].mxu0
    %v540 = vadd.f32 %v244, %v539
    %v541 = vpop.f32.mrb[0].mxu0
    %v542 = vadd.f32 %v240, %v541
    %v543 = vpop.f32.mrb[0].mxu0
    %v544 = vadd.f32 %v244, %v543
    %545 = vmatprep.mubr.bf16.mxu0 %v501
    %546 = vmatmul.mubr.bf16.gmra.mrb[0].mxu0 %v185
    %v547 = vpop.f32.mrb[0].mxu0
    %v548 = vadd.f32 %v240, %v547
    %v549 = vpop.f32.mrb[0].mxu0
    %v550 = vadd.f32 %v244, %v549
    %v551 = vpop.f32.mrb[0].mxu0
    %v552 = vadd.f32 %v240, %v551
    %v553 = vpop.f32.mrb[0].mxu0
    %v554 = vadd.f32 %v244, %v553
    %555 = vdwg.mxu0
    %556 = vmatprep.subr.bf16.mxu0 %v404
    %557 = vmatpush1.bf16.msra.mxu0 %v403
    %558 = vmatprep.subr.bf16.mxu0 %v408
    %559 = vmatpush1.bf16.msra.mxu0 %v407
    %560 = vmatprep.subr.bf16.mxu0 %v412
    %561 = vmatpush1.bf16.msra.mxu0 %v411
    %562 = vmatprep.subr.bf16.mxu0 %v416
    %563 = vmatpush1.bf16.msra.mxu0 %v415
    %564 = vmatprep.subr.bf16.mxu0 %v420
    %565 = vmatpush1.bf16.msra.mxu0 %v419
    %566 = vmatprep.subr.bf16.mxu0 %v424
    %567 = vmatpush1.bf16.msra.mxu0 %v423
    %568 = vmatprep.subr.bf16.mxu0 %v428
    %569 = vmatpush1.bf16.msra.mxu0 %v427
    %570 = vmatprep.subr.bf16.mxu0 %v432
    %571 = vmatpush1.bf16.msra.mxu0 %v431
    %572 = vmatprep.subr.bf16.mxu0 %v436
    %573 = vmatpush1.bf16.msra.mxu0 %v435
    %574 = vmatprep.subr.bf16.mxu0 %v440
    %575 = vmatpush1.bf16.msra.mxu0 %v439
    %576 = vmatprep.subr.bf16.mxu0 %v444
    %577 = vmatpush1.bf16.msra.mxu0 %v443
    %578 = vmatprep.subr.bf16.mxu0 %v448
    %579 = vmatpush1.bf16.msra.mxu0 %v447
    %580 = vmatprep.subr.bf16.mxu0 0
    %581 = vmatpush1.bf16.msra.mxu0 0
    %582 = vmatprep.subr.bf16.mxu0 0
    %583 = vmatpush1.bf16.msra.mxu0 0
    %584 = vmatprep.subr.bf16.mxu0 0
    %585 = vmatpush1.bf16.msra.mxu0 0
    %586 = vmatprep.subr.bf16.mxu0 0
    %587 = vmatpush1.bf16.msra.mxu0 0
    %588 = vmatprep.mubr.bf16.mxu0 %v498
    %589 = vmatmul.mubr.bf16.gmra.mrb[0].mxu0 %v183
    %v590 = vpop.f32.mrb[0].mxu0
    %v591 = vadd.f32 %v248, %v590
    %v592 = vpop.f32.mrb[0].mxu0
    %v593 = vadd.f32 %v252, %v592
    %v594 = vpop.f32.mrb[0].mxu0
    %v595 = vadd.f32 %v248, %v594
    %v596 = vpop.f32.mrb[0].mxu0
    %v597 = vadd.f32 %v252, %v596
    %598 = vmatprep.mubr.bf16.mxu0 %v501
    %599 = vmatmul.mubr.bf16.gmra.mrb[0].mxu0 %v185
    %v600 = vpop.f32.mrb[0].mxu0
    %v601 = vadd.f32 %v248, %v600
    %v602 = vpop.f32.mrb[0].mxu0
    %v603 = vadd.f32 %v252, %v602
    %v604 = vpop.f32.mrb[0].mxu0
    %v605 = vadd.f32 %v248, %v604
    %v606 = vpop.f32.mrb[0].mxu0
    %v607 = vadd.f32 %v252, %v606
    %608 = vdwg.mxu0
    %v609 = vmax.f32 %v538, 0.0
    %v610 = vmax.f32 %v540, 0.0
    %v611 = vmax.f32 %v591, 0.0
    %v612 = vmax.f32 %v593, 0.0
    %v613 = vmax.f32 %v542, 0.0
    %v614 = vmax.f32 %v544, 0.0
    %v615 = vmax.f32 %v595, 0.0
    %v616 = vmax.f32 %v597, 0.0
    %v617 = vmax.f32 %v548, 0.0
    %v618 = vmax.f32 %v550, 0.0
    %v619 = vmax.f32 %v601, 0.0
    %v620 = vmax.f32 %v603, 0.0
    %v621 = vmax.f32 %v552, 0.0
    %v622 = vmax.f32 %v554, 0.0
    %v623 = vmax.f32 %v605, 0.0
    %v624 = vmax.f32 %v607, 0.0
    %v625 = vpack.c.bf16 %v613, %v609
    %v626 = vpack.c.bf16 %v614, %v610
    %v627 = vpack.c.bf16 %v615, %v611
    %v628 = vpack.c.bf16 %v616, %v612
    %v629 = vpack.c.bf16 %v621, %v617
    %v630 = vpack.c.bf16 %v622, %v618
    %v631 = vpack.c.bf16 %v623, %v619
    %v632 = vpack.c.bf16 %v624, %v620
    %v633 = vld [vmem:[#allocation2] sm:$0xff]
    %v634 = vld [vmem:[#allocation2 + $0x8] sm:$0xff]
    %v635 = vld [vmem:[#allocation2 + $0x10] sm:$0xff]
    %v636 = vld [vmem:[#allocation2 + $0x18] sm:$0xff]
    %v637 = vld [vmem:[#allocation2 + $0x20] sm:$0xff]
    %v638 = vld [vmem:[#allocation2 + $0x28] sm:$0xff]
    %v639 = vld [vmem:[#allocation2 + $0x30] sm:$0xff]
    %v640 = vld [vmem:[#allocation2 + $0x38] sm:$0xff]
    %v641 = vld [vmem:[#allocation2 + $0x40] sm:$0xff]
    %v642 = vld [vmem:[#allocation2 + $0x48] sm:$0xff]
    %v643 = vld [vmem:[#allocation2 + $0x50] sm:$0xff]
    %v644 = vld [vmem:[#allocation2 + $0x58] sm:$0xff]
    %v645 = vld [vmem:[#allocation2 + $0x60] sm:$0xff]
    %v646 = vld [vmem:[#allocation2 + $0x68] sm:$0xff]
    %v647 = vld [vmem:[#allocation2 + $0x70] sm:$0xff]
    %v648 = vld [vmem:[#allocation2 + $0x78] sm:$0xff]
    %v649 = vld [vmem:[#allocation2 + $0x80] sm:$0xff]
    %v650 = vld [vmem:[#allocation2 + $0x88] sm:$0xff]
    %v651 = vld [vmem:[#allocation2 + $0x90] sm:$0xff]
    %v652 = vld [vmem:[#allocation2 + $0x98] sm:$0xff]
    %v653 = vld [vmem:[#allocation2 + $0xa0] sm:$0xff]
    %v654 = vld [vmem:[#allocation2 + $0xa8] sm:$0xff]
    %v655 = vld [vmem:[#allocation2 + $0xb0] sm:$0xff]
    %v656 = vld [vmem:[#allocation2 + $0xb8] sm:$0xff]
    %v657 = vld [vmem:[#allocation2 + $0xc0] sm:$0xff]
    %v658 = vld [vmem:[#allocation2 + $0xc8] sm:$0xff]
    %v659 = vld [vmem:[#allocation2 + $0xd0] sm:$0xff]
    %v660 = vld [vmem:[#allocation2 + $0xd8] sm:$0xff]
    %v661 = vld [vmem:[#allocation2 + $0xe0] sm:$0xff]
    %v662 = vld [vmem:[#allocation2 + $0xe8] sm:$0xff]
    %v663 = vld [vmem:[#allocation2 + $0xf0] sm:$0xff]
    %v664 = vld [vmem:[#allocation2 + $0xf8] sm:$0xff]
    %v665 = vld [vmem:[#allocation2 + $0x100] sm:$0xff]
    %v666 = vld [vmem:[#allocation2 + $0x108] sm:$0xff]
    %v667 = vld [vmem:[#allocation2 + $0x110] sm:$0xff]
    %v668 = vld [vmem:[#allocation2 + $0x118] sm:$0xff]
    %v669 = vld [vmem:[#allocation2 + $0x120] sm:$0xff]
    %v670 = vld [vmem:[#allocation2 + $0x128] sm:$0xff]
    %v671 = vld [vmem:[#allocation2 + $0x130] sm:$0xff]
    %v672 = vld [vmem:[#allocation2 + $0x138] sm:$0xff]
    %v673 = vld [vmem:[#allocation2 + $0x140] sm:$0xff]
    %v674 = vld [vmem:[#allocation2 + $0x148] sm:$0xff]
    %v675 = vld [vmem:[#allocation2 + $0x150] sm:$0xff]
    %v676 = vld [vmem:[#allocation2 + $0x158] sm:$0xff]
    %v677 = vld [vmem:[#allocation2 + $0x160] sm:$0xff]
    %v678 = vld [vmem:[#allocation2 + $0x168] sm:$0xff]
    %v679 = vld [vmem:[#allocation2 + $0x170] sm:$0xff]
    %v680 = vld [vmem:[#allocation2 + $0x178] sm:$0xff]
    %v681 = vld [vmem:[#allocation2 + $0x180] sm:$0xff]
    %v682 = vld [vmem:[#allocation2 + $0x188] sm:$0xff]
    %v683 = vld [vmem:[#allocation2 + $0x190] sm:$0xff]
    %v684 = vld [vmem:[#allocation2 + $0x198] sm:$0xff]
    %v685 = vld [vmem:[#allocation2 + $0x1a0] sm:$0xff]
    %v686 = vld [vmem:[#allocation2 + $0x1a8] sm:$0xff]
    %v687 = vld [vmem:[#allocation2 + $0x1b0] sm:$0xff]
    %v688 = vld [vmem:[#allocation2 + $0x1b8] sm:$0xff]
    %v689 = vld [vmem:[#allocation2 + $0x1c0] sm:$0xff]
    %v690 = vld [vmem:[#allocation2 + $0x1c8] sm:$0xff]
    %v691 = vld [vmem:[#allocation2 + $0x1d0] sm:$0xff]
    %v692 = vld [vmem:[#allocation2 + $0x1d8] sm:$0xff]
    %v693 = vld [vmem:[#allocation2 + $0x1e0] sm:$0xff]
    %v694 = vld [vmem:[#allocation2 + $0x1e8] sm:$0xff]
    %v695 = vld [vmem:[#allocation2 + $0x1f0] sm:$0xff]
    %v696 = vld [vmem:[#allocation2 + $0x1f8] sm:$0xff]
    %v697 = vld [vmem:[#allocation2 + $0x200] sm:$0xff]
    %v698 = vld [vmem:[#allocation2 + $0x208] sm:$0xff]
    %v699 = vld [vmem:[#allocation2 + $0x210] sm:$0xff]
    %v700 = vld [vmem:[#allocation2 + $0x218] sm:$0xff]
    %v701 = vld [vmem:[#allocation2 + $0x220] sm:$0xff]
    %v702 = vld [vmem:[#allocation2 + $0x228] sm:$0xff]
    %v703 = vld [vmem:[#allocation2 + $0x230] sm:$0xff]
    %v704 = vld [vmem:[#allocation2 + $0x238] sm:$0xff]
    %v705 = vld [vmem:[#allocation2 + $0x240] sm:$0xff]
    %v706 = vld [vmem:[#allocation2 + $0x248] sm:$0xff]
    %v707 = vld [vmem:[#allocation2 + $0x250] sm:$0xff]
    %v708 = vld [vmem:[#allocation2 + $0x258] sm:$0xff]
    %v709 = vld [vmem:[#allocation2 + $0x260] sm:$0xff]
    %v710 = vld [vmem:[#allocation2 + $0x268] sm:$0xff]
    %v711 = vld [vmem:[#allocation2 + $0x270] sm:$0xff]
    %v712 = vld [vmem:[#allocation2 + $0x278] sm:$0xff]
    %v713 = vld [vmem:[#allocation2 + $0x280] sm:$0xff]
    %v714 = vld [vmem:[#allocation2 + $0x288] sm:$0xff]
    %v715 = vld [vmem:[#allocation2 + $0x290] sm:$0xff]
    %v716 = vld [vmem:[#allocation2 + $0x298] sm:$0xff]
    %v717 = vld [vmem:[#allocation2 + $0x2a0] sm:$0xff]
    %v718 = vld [vmem:[#allocation2 + $0x2a8] sm:$0xff]
    %v719 = vld [vmem:[#allocation2 + $0x2b0] sm:$0xff]
    %v720 = vld [vmem:[#allocation2 + $0x2b8] sm:$0xff]
    %v721 = vld [vmem:[#allocation2 + $0x2c0] sm:$0xff]
    %v722 = vld [vmem:[#allocation2 + $0x2c8] sm:$0xff]
    %v723 = vld [vmem:[#allocation2 + $0x2d0] sm:$0xff]
    %v724 = vld [vmem:[#allocation2 + $0x2d8] sm:$0xff]
    %v725 = vld [vmem:[#allocation2 + $0x2e0] sm:$0xff]
    %v726 = vld [vmem:[#allocation2 + $0x2e8] sm:$0xff]
    %v727 = vld [vmem:[#allocation2 + $0x2f0] sm:$0xff]
    %v728 = vld [vmem:[#allocation2 + $0x2f8] sm:$0xff]
    %v729 = vld [vmem:[#allocation2 + $0x300] sm:$0xff]
    %v730 = vld [vmem:[#allocation2 + $0x308] sm:$0xff]
    %v731 = vld [vmem:[#allocation2 + $0x310] sm:$0xff]
    %v732 = vld [vmem:[#allocation2 + $0x318] sm:$0xff]
    %v733 = vld [vmem:[#allocation2 + $0x320] sm:$0xff]
    %v734 = vld [vmem:[#allocation2 + $0x328] sm:$0xff]
    %v735 = vld [vmem:[#allocation2 + $0x330] sm:$0xff]
    %v736 = vld [vmem:[#allocation2 + $0x338] sm:$0xff]
    %v737 = vld [vmem:[#allocation2 + $0x340] sm:$0xff]
    %v738 = vld [vmem:[#allocation2 + $0x348] sm:$0xff]
    %v739 = vld [vmem:[#allocation2 + $0x350] sm:$0xff]
    %v740 = vld [vmem:[#allocation2 + $0x358] sm:$0xff]
    %v741 = vld [vmem:[#allocation2 + $0x360] sm:$0xff]
    %v742 = vld [vmem:[#allocation2 + $0x368] sm:$0xff]
    %v743 = vld [vmem:[#allocation2 + $0x370] sm:$0xff]
    %v744 = vld [vmem:[#allocation2 + $0x378] sm:$0xff]
    %v745 = vld [vmem:[#allocation2 + $0x380] sm:$0xff]
    %v746 = vld [vmem:[#allocation2 + $0x388] sm:$0xff]
    %v747 = vld [vmem:[#allocation2 + $0x390] sm:$0xff]
    %v748 = vld [vmem:[#allocation2 + $0x398] sm:$0xff]
    %v749 = vld [vmem:[#allocation2 + $0x3a0] sm:$0xff]
    %v750 = vld [vmem:[#allocation2 + $0x3a8] sm:$0xff]
    %v751 = vld [vmem:[#allocation2 + $0x3b0] sm:$0xff]
    %v752 = vld [vmem:[#allocation2 + $0x3b8] sm:$0xff]
    %v753 = vld [vmem:[#allocation2 + $0x3c0] sm:$0xff]
    %v754 = vld [vmem:[#allocation2 + $0x3c8] sm:$0xff]
    %v755 = vld [vmem:[#allocation2 + $0x3d0] sm:$0xff]
    %v756 = vld [vmem:[#allocation2 + $0x3d8] sm:$0xff]
    %v757 = vld [vmem:[#allocation2 + $0x3e0] sm:$0xff]
    %v758 = vld [vmem:[#allocation2 + $0x3e8] sm:$0xff]
    %v759 = vld [vmem:[#allocation2 + $0x3f0] sm:$0xff]
    %v760 = vld [vmem:[#allocation2 + $0x3f8] sm:$0xff]
    %v761 = vld [vmem:[%s4] sm:$0xf]
    %v763 = vlaneseq
    %v764 = vshrl.u32 %v763, 7
    %v765 = vsub.s32 0, %v764
    %v766 = vrot.slane %v761, %v765
    %v767 = vlaneseq
    %v768 = vshrl.u32 %v767, 7
    %v769 = vsub.s32 1, %v768
    %v770 = vrot.slane %v761, %v769
    %v771 = vlaneseq
    %v772 = vshrl.u32 %v771, 7
    %v773 = vsub.s32 2, %v772
    %v774 = vrot.slane %v761, %v773
    %v775 = vlaneseq
    %v776 = vshrl.u32 %v775, 7
    %v777 = vsub.s32 3, %v776
    %v778 = vrot.slane %v761, %v777
    %v911 = vunpack.c.l.b16 %v633
    %v912 = vunpack.c.h.b16 %v633
    %v913 = vunpack.c.l.b16 %v634
    %v914 = vunpack.c.h.b16 %v634
    %v915 = vunpack.c.l.b16 %v635
    %v916 = vunpack.c.h.b16 %v635
    %v917 = vunpack.c.l.b16 %v636
    %v918 = vunpack.c.h.b16 %v636
    %v919 = vunpack.c.l.b16 %v637
    %v920 = vunpack.c.h.b16 %v637
    %v921 = vunpack.c.l.b16 %v638
    %v922 = vunpack.c.h.b16 %v638
    %v923 = vunpack.c.l.b16 %v639
    %v924 = vunpack.c.h.b16 %v639
    %v925 = vunpack.c.l.b16 %v640
    %v926 = vunpack.c.h.b16 %v640
    %v927 = vunpack.c.l.b16 %v641
    %v928 = vunpack.c.h.b16 %v641
    %v929 = vunpack.c.l.b16 %v642
    %v930 = vunpack.c.h.b16 %v642
    %v931 = vunpack.c.l.b16 %v643
    %v932 = vunpack.c.h.b16 %v643
    %v933 = vunpack.c.l.b16 %v644
    %v934 = vunpack.c.h.b16 %v644
    %v935 = vunpack.c.l.b16 %v645
    %v936 = vunpack.c.h.b16 %v645
    %v937 = vunpack.c.l.b16 %v646
    %v938 = vunpack.c.h.b16 %v646
    %v939 = vunpack.c.l.b16 %v647
    %v940 = vunpack.c.h.b16 %v647
    %v941 = vunpack.c.l.b16 %v648
    %v942 = vunpack.c.h.b16 %v648
    %v943 = vunpack.c.l.b16 %v649
    %v944 = vunpack.c.h.b16 %v649
    %v945 = vunpack.c.l.b16 %v650
    %v946 = vunpack.c.h.b16 %v650
    %v947 = vunpack.c.l.b16 %v651
    %v948 = vunpack.c.h.b16 %v651
    %v949 = vunpack.c.l.b16 %v652
    %v950 = vunpack.c.h.b16 %v652
    %v951 = vunpack.c.l.b16 %v653
    %v952 = vunpack.c.h.b16 %v653
    %v953 = vunpack.c.l.b16 %v654
    %v954 = vunpack.c.h.b16 %v654
    %v955 = vunpack.c.l.b16 %v655
    %v956 = vunpack.c.h.b16 %v655
    %v957 = vunpack.c.l.b16 %v656
    %v958 = vunpack.c.h.b16 %v656
    %v959 = vunpack.c.l.b16 %v657
    %v960 = vunpack.c.h.b16 %v657
    %v961 = vunpack.c.l.b16 %v658
    %v962 = vunpack.c.h.b16 %v658
    %v963 = vunpack.c.l.b16 %v659
    %v964 = vunpack.c.h.b16 %v659
    %v965 = vunpack.c.l.b16 %v660
    %v966 = vunpack.c.h.b16 %v660
    %v967 = vunpack.c.l.b16 %v661
    %v968 = vunpack.c.h.b16 %v661
    %v969 = vunpack.c.l.b16 %v662
    %v970 = vunpack.c.h.b16 %v662
    %v971 = vunpack.c.l.b16 %v663
    %v972 = vunpack.c.h.b16 %v663
    %v973 = vunpack.c.l.b16 %v664
    %v974 = vunpack.c.h.b16 %v664
    %v975 = vunpack.c.l.b16 %v665
    %v976 = vunpack.c.h.b16 %v665
    %v977 = vunpack.c.l.b16 %v666
    %v978 = vunpack.c.h.b16 %v666
    %v979 = vunpack.c.l.b16 %v667
    %v980 = vunpack.c.h.b16 %v667
    %v981 = vunpack.c.l.b16 %v668
    %v982 = vunpack.c.h.b16 %v668
    %v983 = vunpack.c.l.b16 %v669
    %v984 = vunpack.c.h.b16 %v669
    %v985 = vunpack.c.l.b16 %v670
    %v986 = vunpack.c.h.b16 %v670
    %v987 = vunpack.c.l.b16 %v671
    %v988 = vunpack.c.h.b16 %v671
    %v989 = vunpack.c.l.b16 %v672
    %v990 = vunpack.c.h.b16 %v672
    %v991 = vunpack.c.l.b16 %v673
    %v992 = vunpack.c.h.b16 %v673
    %v993 = vunpack.c.l.b16 %v674
    %v994 = vunpack.c.h.b16 %v674
    %v995 = vunpack.c.l.b16 %v675
    %v996 = vunpack.c.h.b16 %v675
    %v997 = vunpack.c.l.b16 %v676
    %v998 = vunpack.c.h.b16 %v676
    %v999 = vunpack.c.l.b16 %v677
    %v1000 = vunpack.c.h.b16 %v677
    %v1001 = vunpack.c.l.b16 %v678
    %v1002 = vunpack.c.h.b16 %v678
    %v1003 = vunpack.c.l.b16 %v679
    %v1004 = vunpack.c.h.b16 %v679
    %v1005 = vunpack.c.l.b16 %v680
    %v1006 = vunpack.c.h.b16 %v680
    %v1007 = vunpack.c.l.b16 %v681
    %v1008 = vunpack.c.h.b16 %v681
    %v1009 = vunpack.c.l.b16 %v682
    %v1010 = vunpack.c.h.b16 %v682
    %v1011 = vunpack.c.l.b16 %v683
    %v1012 = vunpack.c.h.b16 %v683
    %v1013 = vunpack.c.l.b16 %v684
    %v1014 = vunpack.c.h.b16 %v684
    %v1015 = vunpack.c.l.b16 %v685
    %v1016 = vunpack.c.h.b16 %v685
    %v1017 = vunpack.c.l.b16 %v686
    %v1018 = vunpack.c.h.b16 %v686
    %v1019 = vunpack.c.l.b16 %v687
    %v1020 = vunpack.c.h.b16 %v687
    %v1021 = vunpack.c.l.b16 %v688
    %v1022 = vunpack.c.h.b16 %v688
    %v1023 = vunpack.c.l.b16 %v689
    %v1024 = vunpack.c.h.b16 %v689
    %v1025 = vunpack.c.l.b16 %v690
    %v1026 = vunpack.c.h.b16 %v690
    %v1027 = vunpack.c.l.b16 %v691
    %v1028 = vunpack.c.h.b16 %v691
    %v1029 = vunpack.c.l.b16 %v692
    %v1030 = vunpack.c.h.b16 %v692
    %v1031 = vunpack.c.l.b16 %v693
    %v1032 = vunpack.c.h.b16 %v693
    %v1033 = vunpack.c.l.b16 %v694
    %v1034 = vunpack.c.h.b16 %v694
    %v1035 = vunpack.c.l.b16 %v695
    %v1036 = vunpack.c.h.b16 %v695
    %v1037 = vunpack.c.l.b16 %v696
    %v1038 = vunpack.c.h.b16 %v696
    %v1039 = vunpack.c.l.b16 %v697
    %v1040 = vunpack.c.h.b16 %v697
    %v1041 = vunpack.c.l.b16 %v698
    %v1042 = vunpack.c.h.b16 %v698
    %v1043 = vunpack.c.l.b16 %v699
    %v1044 = vunpack.c.h.b16 %v699
    %v1045 = vunpack.c.l.b16 %v700
    %v1046 = vunpack.c.h.b16 %v700
    %v1047 = vunpack.c.l.b16 %v701
    %v1048 = vunpack.c.h.b16 %v701
    %v1049 = vunpack.c.l.b16 %v702
    %v1050 = vunpack.c.h.b16 %v702
    %v1051 = vunpack.c.l.b16 %v703
    %v1052 = vunpack.c.h.b16 %v703
    %v1053 = vunpack.c.l.b16 %v704
    %v1054 = vunpack.c.h.b16 %v704
    %v1055 = vunpack.c.l.b16 %v705
    %v1056 = vunpack.c.h.b16 %v705
    %v1057 = vunpack.c.l.b16 %v706
    %v1058 = vunpack.c.h.b16 %v706
    %v1059 = vunpack.c.l.b16 %v707
    %v1060 = vunpack.c.h.b16 %v707
    %v1061 = vunpack.c.l.b16 %v708
    %v1062 = vunpack.c.h.b16 %v708
    %v1063 = vunpack.c.l.b16 %v709
    %v1064 = vunpack.c.h.b16 %v709
    %v1065 = vunpack.c.l.b16 %v710
    %v1066 = vunpack.c.h.b16 %v710
    %v1067 = vunpack.c.l.b16 %v711
    %v1068 = vunpack.c.h.b16 %v711
    %v1069 = vunpack.c.l.b16 %v712
    %v1070 = vunpack.c.h.b16 %v712
    %v1071 = vunpack.c.l.b16 %v713
    %v1072 = vunpack.c.h.b16 %v713
    %v1073 = vunpack.c.l.b16 %v714
    %v1074 = vunpack.c.h.b16 %v714
    %v1075 = vunpack.c.l.b16 %v715
    %v1076 = vunpack.c.h.b16 %v715
    %v1077 = vunpack.c.l.b16 %v716
    %v1078 = vunpack.c.h.b16 %v716
    %v1079 = vunpack.c.l.b16 %v717
    %v1080 = vunpack.c.h.b16 %v717
    %v1081 = vunpack.c.l.b16 %v718
    %v1082 = vunpack.c.h.b16 %v718
    %v1083 = vunpack.c.l.b16 %v719
    %v1084 = vunpack.c.h.b16 %v719
    %v1085 = vunpack.c.l.b16 %v720
    %v1086 = vunpack.c.h.b16 %v720
    %v1087 = vunpack.c.l.b16 %v721
    %v1088 = vunpack.c.h.b16 %v721
    %v1089 = vunpack.c.l.b16 %v722
    %v1090 = vunpack.c.h.b16 %v722
    %v1091 = vunpack.c.l.b16 %v723
    %v1092 = vunpack.c.h.b16 %v723
    %v1093 = vunpack.c.l.b16 %v724
    %v1094 = vunpack.c.h.b16 %v724
    %v1095 = vunpack.c.l.b16 %v725
    %v1096 = vunpack.c.h.b16 %v725
    %v1097 = vunpack.c.l.b16 %v726
    %v1098 = vunpack.c.h.b16 %v726
    %v1099 = vunpack.c.l.b16 %v727
    %v1100 = vunpack.c.h.b16 %v727
    %v1101 = vunpack.c.l.b16 %v728
    %v1102 = vunpack.c.h.b16 %v728
    %v1103 = vunpack.c.l.b16 %v729
    %v1104 = vunpack.c.h.b16 %v729
    %v1105 = vunpack.c.l.b16 %v730
    %v1106 = vunpack.c.h.b16 %v730
    %v1107 = vunpack.c.l.b16 %v731
    %v1108 = vunpack.c.h.b16 %v731
    %v1109 = vunpack.c.l.b16 %v732
    %v1110 = vunpack.c.h.b16 %v732
    %v1111 = vunpack.c.l.b16 %v733
    %v1112 = vunpack.c.h.b16 %v733
    %v1113 = vunpack.c.l.b16 %v734
    %v1114 = vunpack.c.h.b16 %v734
    %v1115 = vunpack.c.l.b16 %v735
    %v1116 = vunpack.c.h.b16 %v735
    %v1117 = vunpack.c.l.b16 %v736
    %v1118 = vunpack.c.h.b16 %v736
    %v1119 = vunpack.c.l.b16 %v737
    %v1120 = vunpack.c.h.b16 %v737
    %v1121 = vunpack.c.l.b16 %v738
    %v1122 = vunpack.c.h.b16 %v738
    %v1123 = vunpack.c.l.b16 %v739
    %v1124 = vunpack.c.h.b16 %v739
    %v1125 = vunpack.c.l.b16 %v740
    %v1126 = vunpack.c.h.b16 %v740
    %v1127 = vunpack.c.l.b16 %v741
    %v1128 = vunpack.c.h.b16 %v741
    %v1129 = vunpack.c.l.b16 %v742
    %v1130 = vunpack.c.h.b16 %v742
    %v1131 = vunpack.c.l.b16 %v743
    %v1132 = vunpack.c.h.b16 %v743
    %v1133 = vunpack.c.l.b16 %v744
    %v1134 = vunpack.c.h.b16 %v744
    %v1135 = vunpack.c.l.b16 %v745
    %v1136 = vunpack.c.h.b16 %v745
    %v1137 = vunpack.c.l.b16 %v746
    %v1138 = vunpack.c.h.b16 %v746
    %v1139 = vunpack.c.l.b16 %v747
    %v1140 = vunpack.c.h.b16 %v747
    %v1141 = vunpack.c.l.b16 %v748
    %v1142 = vunpack.c.h.b16 %v748
    %v1143 = vunpack.c.l.b16 %v749
    %v1144 = vunpack.c.h.b16 %v749
    %v1145 = vunpack.c.l.b16 %v750
    %v1146 = vunpack.c.h.b16 %v750
    %v1147 = vunpack.c.l.b16 %v751
    %v1148 = vunpack.c.h.b16 %v751
    %v1149 = vunpack.c.l.b16 %v752
    %v1150 = vunpack.c.h.b16 %v752
    %v1151 = vunpack.c.l.b16 %v753
    %v1152 = vunpack.c.h.b16 %v753
    %v1153 = vunpack.c.l.b16 %v754
    %v1154 = vunpack.c.h.b16 %v754
    %v1155 = vunpack.c.l.b16 %v755
    %v1156 = vunpack.c.h.b16 %v755
    %v1157 = vunpack.c.l.b16 %v756
    %v1158 = vunpack.c.h.b16 %v756
    %v1159 = vunpack.c.l.b16 %v757
    %v1160 = vunpack.c.h.b16 %v757
    %v1161 = vunpack.c.l.b16 %v758
    %v1162 = vunpack.c.h.b16 %v758
    %v1163 = vunpack.c.l.b16 %v759
    %v1164 = vunpack.c.h.b16 %v759
    %v1165 = vunpack.c.l.b16 %v760
    %v1166 = vunpack.c.h.b16 %v760
    %v1167 = vpack.c.b16 %v915, %v911
    %v1168 = vpack.c.b16 %v916, %v912
    %v1169 = vpack.c.b16 %v917, %v913
    %v1170 = vpack.c.b16 %v918, %v914
    %v1171 = vpack.c.b16 %v923, %v919
    %v1172 = vpack.c.b16 %v924, %v920
    %v1173 = vpack.c.b16 %v925, %v921
    %v1174 = vpack.c.b16 %v926, %v922
    %v1175 = vpack.c.b16 %v931, %v927
    %v1176 = vpack.c.b16 %v932, %v928
    %v1177 = vpack.c.b16 %v933, %v929
    %v1178 = vpack.c.b16 %v934, %v930
    %v1179 = vpack.c.b16 %v939, %v935
    %v1180 = vpack.c.b16 %v940, %v936
    %v1181 = vpack.c.b16 %v941, %v937
    %v1182 = vpack.c.b16 %v942, %v938
    %v1183 = vpack.c.b16 %v947, %v943
    %v1184 = vpack.c.b16 %v948, %v944
    %v1185 = vpack.c.b16 %v949, %v945
    %v1186 = vpack.c.b16 %v950, %v946
    %v1187 = vpack.c.b16 %v955, %v951
    %v1188 = vpack.c.b16 %v956, %v952
    %v1189 = vpack.c.b16 %v957, %v953
    %v1190 = vpack.c.b16 %v958, %v954
    %v1191 = vpack.c.b16 %v963, %v959
    %v1192 = vpack.c.b16 %v964, %v960
    %v1193 = vpack.c.b16 %v965, %v961
    %v1194 = vpack.c.b16 %v966, %v962
    %v1195 = vpack.c.b16 %v971, %v967
    %v1196 = vpack.c.b16 %v972, %v968
    %v1197 = vpack.c.b16 %v973, %v969
    %v1198 = vpack.c.b16 %v974, %v970
    %v1199 = vpack.c.b16 %v979, %v975
    %v1200 = vpack.c.b16 %v980, %v976
    %v1201 = vpack.c.b16 %v981, %v977
    %v1202 = vpack.c.b16 %v982, %v978
    %v1203 = vpack.c.b16 %v987, %v983
    %v1204 = vpack.c.b16 %v988, %v984
    %v1205 = vpack.c.b16 %v989, %v985
    %v1206 = vpack.c.b16 %v990, %v986
    %v1207 = vpack.c.b16 %v995, %v991
    %v1208 = vpack.c.b16 %v996, %v992
    %v1209 = vpack.c.b16 %v997, %v993
    %v1210 = vpack.c.b16 %v998, %v994
    %v1211 = vpack.c.b16 %v1003, %v999
    %v1212 = vpack.c.b16 %v1004, %v1000
    %v1213 = vpack.c.b16 %v1005, %v1001
    %v1214 = vpack.c.b16 %v1006, %v1002
    %v1215 = vpack.c.b16 %v1011, %v1007
    %v1216 = vpack.c.b16 %v1012, %v1008
    %v1217 = vpack.c.b16 %v1013, %v1009
    %v1218 = vpack.c.b16 %v1014, %v1010
    %v1219 = vpack.c.b16 %v1019, %v1015
    %v1220 = vpack.c.b16 %v1020, %v1016
    %v1221 = vpack.c.b16 %v1021, %v1017
    %v1222 = vpack.c.b16 %v1022, %v1018
    %v1223 = vpack.c.b16 %v1027, %v1023
    %v1224 = vpack.c.b16 %v1028, %v1024
    %v1225 = vpack.c.b16 %v1029, %v1025
    %v1226 = vpack.c.b16 %v1030, %v1026
    %v1227 = vpack.c.b16 %v1035, %v1031
    %v1228 = vpack.c.b16 %v1036, %v1032
    %v1229 = vpack.c.b16 %v1037, %v1033
    %v1230 = vpack.c.b16 %v1038, %v1034
    %v1231 = vpack.c.b16 %v1043, %v1039
    %v1232 = vpack.c.b16 %v1044, %v1040
    %v1233 = vpack.c.b16 %v1045, %v1041
    %v1234 = vpack.c.b16 %v1046, %v1042
    %v1235 = vpack.c.b16 %v1051, %v1047
    %v1236 = vpack.c.b16 %v1052, %v1048
    %v1237 = vpack.c.b16 %v1053, %v1049
    %v1238 = vpack.c.b16 %v1054, %v1050
    %v1239 = vpack.c.b16 %v1059, %v1055
    %v1240 = vpack.c.b16 %v1060, %v1056
    %v1241 = vpack.c.b16 %v1061, %v1057
    %v1242 = vpack.c.b16 %v1062, %v1058
    %v1243 = vpack.c.b16 %v1067, %v1063
    %v1244 = vpack.c.b16 %v1068, %v1064
    %v1245 = vpack.c.b16 %v1069, %v1065
    %v1246 = vpack.c.b16 %v1070, %v1066
    %v1247 = vpack.c.b16 %v1075, %v1071
    %v1248 = vpack.c.b16 %v1076, %v1072
    %v1249 = vpack.c.b16 %v1077, %v1073
    %v1250 = vpack.c.b16 %v1078, %v1074
    %v1251 = vpack.c.b16 %v1083, %v1079
    %v1252 = vpack.c.b16 %v1084, %v1080
    %v1253 = vpack.c.b16 %v1085, %v1081
    %v1254 = vpack.c.b16 %v1086, %v1082
    %v1255 = vpack.c.b16 %v1091, %v1087
    %v1256 = vpack.c.b16 %v1092, %v1088
    %v1257 = vpack.c.b16 %v1093, %v1089
    %v1258 = vpack.c.b16 %v1094, %v1090
    %v1259 = vpack.c.b16 %v1099, %v1095
    %v1260 = vpack.c.b16 %v1100, %v1096
    %v1261 = vpack.c.b16 %v1101, %v1097
    %v1262 = vpack.c.b16 %v1102, %v1098
    %v1263 = vpack.c.b16 %v1107, %v1103
    %v1264 = vpack.c.b16 %v1108, %v1104
    %v1265 = vpack.c.b16 %v1109, %v1105
    %v1266 = vpack.c.b16 %v1110, %v1106
    %v1267 = vpack.c.b16 %v1115, %v1111
    %v1268 = vpack.c.b16 %v1116, %v1112
    %v1269 = vpack.c.b16 %v1117, %v1113
    %v1270 = vpack.c.b16 %v1118, %v1114
    %v1271 = vpack.c.b16 %v1123, %v1119
    %v1272 = vpack.c.b16 %v1124, %v1120
    %v1273 = vpack.c.b16 %v1125, %v1121
    %v1274 = vpack.c.b16 %v1126, %v1122
    %v1275 = vpack.c.b16 %v1131, %v1127
    %v1276 = vpack.c.b16 %v1132, %v1128
    %v1277 = vpack.c.b16 %v1133, %v1129
    %v1278 = vpack.c.b16 %v1134, %v1130
    %v1279 = vpack.c.b16 %v1139, %v1135
    %v1280 = vpack.c.b16 %v1140, %v1136
    %v1281 = vpack.c.b16 %v1141, %v1137
    %v1282 = vpack.c.b16 %v1142, %v1138
    %v1283 = vpack.c.b16 %v1147, %v1143
    %v1284 = vpack.c.b16 %v1148, %v1144
    %v1285 = vpack.c.b16 %v1149, %v1145
    %v1286 = vpack.c.b16 %v1150, %v1146
    %v1287 = vpack.c.b16 %v1155, %v1151
    %v1288 = vpack.c.b16 %v1156, %v1152
    %v1289 = vpack.c.b16 %v1157, %v1153
    %v1290 = vpack.c.b16 %v1158, %v1154
    %v1291 = vpack.c.b16 %v1163, %v1159
    %v1292 = vpack.c.b16 %v1164, %v1160
    %v1293 = vpack.c.b16 %v1165, %v1161
    %v1294 = vpack.c.b16 %v1166, %v1162
    %1423 = vmatprep.subr.bf16.mxu0 %v1168
    %1424 = vmatpush1.bf16.msra.mxu0 %v1167
    %1425 = vmatprep.subr.bf16.mxu0 %v1172
    %1426 = vmatpush1.bf16.msra.mxu0 %v1171
    %1427 = vmatprep.subr.bf16.mxu0 %v1176
    %1428 = vmatpush1.bf16.msra.mxu0 %v1175
    %1429 = vmatprep.subr.bf16.mxu0 %v1180
    %1430 = vmatpush1.bf16.msra.mxu0 %v1179
    %1431 = vmatprep.subr.bf16.mxu0 %v1184
    %1432 = vmatpush1.bf16.msra.mxu0 %v1183
    %1433 = vmatprep.subr.bf16.mxu0 %v1188
    %1434 = vmatpush1.bf16.msra.mxu0 %v1187
    %1435 = vmatprep.subr.bf16.mxu0 %v1192
    %1436 = vmatpush1.bf16.msra.mxu0 %v1191
    %1437 = vmatprep.subr.bf16.mxu0 %v1196
    %1438 = vmatpush1.bf16.msra.mxu0 %v1195
    %1439 = vmatprep.subr.bf16.mxu0 %v1200
    %1440 = vmatpush1.bf16.msra.mxu0 %v1199
    %1441 = vmatprep.subr.bf16.mxu0 %v1204
    %1442 = vmatpush1.bf16.msra.mxu0 %v1203
    %1443 = vmatprep.subr.bf16.mxu0 %v1208
    %1444 = vmatpush1.bf16.msra.mxu0 %v1207
    %1445 = vmatprep.subr.bf16.mxu0 %v1212
    %1446 = vmatpush1.bf16.msra.mxu0 %v1211
    %1447 = vmatprep.subr.bf16.mxu0 %v1216
    %1448 = vmatpush1.bf16.msra.mxu0 %v1215
    %1449 = vmatprep.subr.bf16.mxu0 %v1220
    %1450 = vmatpush1.bf16.msra.mxu0 %v1219
    %1451 = vmatprep.subr.bf16.mxu0 %v1224
    %1452 = vmatpush1.bf16.msra.mxu0 %v1223
    %1453 = vmatprep.subr.bf16.mxu0 %v1228
    %1454 = vmatpush1.bf16.msra.mxu0 %v1227
    %1455 = vmatprep.mubr.bf16.mxu0 %v626
    %1456 = vmatmul.mubr.bf16.gmra.mrb[0].mxu0 %v625
    %v1457 = vpop.f32.mrb[0].mxu0
    %v1458 = vadd.f32 %v766, %v1457
    %v1459 = vpop.f32.mrb[0].mxu0
    %v1460 = vadd.f32 %v770, %v1459
    %v1461 = vpop.f32.mrb[0].mxu0
    %v1462 = vadd.f32 %v766, %v1461
    %v1463 = vpop.f32.mrb[0].mxu0
    %v1464 = vadd.f32 %v770, %v1463
    %1465 = vmatprep.mubr.bf16.mxu0 %v630
    %1466 = vmatmul.mubr.bf16.gmra.mrb[0].mxu0 %v629
    %v1467 = vpop.f32.mrb[0].mxu0
    %v1468 = vadd.f32 %v766, %v1467
    %v1469 = vpop.f32.mrb[0].mxu0
    %v1470 = vadd.f32 %v770, %v1469
    %v1471 = vpop.f32.mrb[0].mxu0
    %v1472 = vadd.f32 %v766, %v1471
    %v1473 = vpop.f32.mrb[0].mxu0
    %v1474 = vadd.f32 %v770, %v1473
    %1475 = vdwg.mxu0
    %1476 = vmatprep.subr.bf16.mxu0 %v1232
    %1477 = vmatpush1.bf16.msra.mxu0 %v1231
    %1478 = vmatprep.subr.bf16.mxu0 %v1236
    %1479 = vmatpush1.bf16.msra.mxu0 %v1235
    %1480 = vmatprep.subr.bf16.mxu0 %v1240
    %1481 = vmatpush1.bf16.msra.mxu0 %v1239
    %1482 = vmatprep.subr.bf16.mxu0 %v1244
    %1483 = vmatpush1.bf16.msra.mxu0 %v1243
    %1484 = vmatprep.subr.bf16.mxu0 %v1248
    %1485 = vmatpush1.bf16.msra.mxu0 %v1247
    %1486 = vmatprep.subr.bf16.mxu0 %v1252
    %1487 = vmatpush1.bf16.msra.mxu0 %v1251
    %1488 = vmatprep.subr.bf16.mxu0 %v1256
    %1489 = vmatpush1.bf16.msra.mxu0 %v1255
    %1490 = vmatprep.subr.bf16.mxu0 %v1260
    %1491 = vmatpush1.bf16.msra.mxu0 %v1259
    %1492 = vmatprep.subr.bf16.mxu0 %v1264
    %1493 = vmatpush1.bf16.msra.mxu0 %v1263
    %1494 = vmatprep.subr.bf16.mxu0 %v1268
    %1495 = vmatpush1.bf16.msra.mxu0 %v1267
    %1496 = vmatprep.subr.bf16.mxu0 %v1272
    %1497 = vmatpush1.bf16.msra.mxu0 %v1271
    %1498 = vmatprep.subr.bf16.mxu0 %v1276
    %1499 = vmatpush1.bf16.msra.mxu0 %v1275
    %1500 = vmatprep.subr.bf16.mxu0 %v1280
    %1501 = vmatpush1.bf16.msra.mxu0 %v1279
    %1502 = vmatprep.subr.bf16.mxu0 %v1284
    %1503 = vmatpush1.bf16.msra.mxu0 %v1283
    %1504 = vmatprep.subr.bf16.mxu0 %v1288
    %1505 = vmatpush1.bf16.msra.mxu0 %v1287
    %1506 = vmatprep.subr.bf16.mxu0 %v1292
    %1507 = vmatpush1.bf16.msra.mxu0 %v1291
    %1508 = vmatprep.mubr.bf16.mxu0 %v628
    %1509 = vmatmul.mubr.bf16.gmra.mrb[0].mxu0 %v627
    %v1510 = vpop.f32.mrb[0].mxu0
    %v1511 = vadd.f32 %v1458, %v1510
    %v1512 = vpop.f32.mrb[0].mxu0
    %v1513 = vadd.f32 %v1460, %v1512
    %v1514 = vpop.f32.mrb[0].mxu0
    %v1515 = vadd.f32 %v1462, %v1514
    %v1516 = vpop.f32.mrb[0].mxu0
    %v1517 = vadd.f32 %v1464, %v1516
    %1518 = vmatprep.mubr.bf16.mxu0 %v632
    %1519 = vmatmul.mubr.bf16.gmra.mrb[0].mxu0 %v631
    %v1520 = vpop.f32.mrb[0].mxu0
    %v1521 = vadd.f32 %v1468, %v1520
    %v1522 = vpop.f32.mrb[0].mxu0
    %v1523 = vadd.f32 %v1470, %v1522
    %v1524 = vpop.f32.mrb[0].mxu0
    %v1525 = vadd.f32 %v1472, %v1524
    %v1526 = vpop.f32.mrb[0].mxu0
    %v1527 = vadd.f32 %v1474, %v1526
    %1528 = vdwg.mxu0
    %1529 = vmatprep.subr.bf16.mxu0 %v1170
    %1530 = vmatpush1.bf16.msra.mxu0 %v1169
    %1531 = vmatprep.subr.bf16.mxu0 %v1174
    %1532 = vmatpush1.bf16.msra.mxu0 %v1173
    %1533 = vmatprep.subr.bf16.mxu0 %v1178
    %1534 = vmatpush1.bf16.msra.mxu0 %v1177
    %1535 = vmatprep.subr.bf16.mxu0 %v1182
    %1536 = vmatpush1.bf16.msra.mxu0 %v1181
    %1537 = vmatprep.subr.bf16.mxu0 %v1186
    %1538 = vmatpush1.bf16.msra.mxu0 %v1185
    %1539 = vmatprep.subr.bf16.mxu0 %v1190
    %1540 = vmatpush1.bf16.msra.mxu0 %v1189
    %1541 = vmatprep.subr.bf16.mxu0 %v1194
    %1542 = vmatpush1.bf16.msra.mxu0 %v1193
    %1543 = vmatprep.subr.bf16.mxu0 %v1198
    %1544 = vmatpush1.bf16.msra.mxu0 %v1197
    %1545 = vmatprep.subr.bf16.mxu0 %v1202
    %1546 = vmatpush1.bf16.msra.mxu0 %v1201
    %1547 = vmatprep.subr.bf16.mxu0 %v1206
    %1548 = vmatpush1.bf16.msra.mxu0 %v1205
    %1549 = vmatprep.subr.bf16.mxu0 %v1210
    %1550 = vmatpush1.bf16.msra.mxu0 %v1209
    %1551 = vmatprep.subr.bf16.mxu0 %v1214
    %1552 = vmatpush1.bf16.msra.mxu0 %v1213
    %1553 = vmatprep.subr.bf16.mxu0 %v1218
    %1554 = vmatpush1.bf16.msra.mxu0 %v1217
    %1555 = vmatprep.subr.bf16.mxu0 %v1222
    %1556 = vmatpush1.bf16.msra.mxu0 %v1221
    %1557 = vmatprep.subr.bf16.mxu0 %v1226
    %1558 = vmatpush1.bf16.msra.mxu0 %v1225
    %1559 = vmatprep.subr.bf16.mxu0 %v1230
    %1560 = vmatpush1.bf16.msra.mxu0 %v1229
    %1561 = vmatprep.mubr.bf16.mxu0 %v626
    %1562 = vmatmul.mubr.bf16.gmra.mrb[0].mxu0 %v625
    %v1563 = vpop.f32.mrb[0].mxu0
    %v1564 = vadd.f32 %v774, %v1563
    %v1565 = vpop.f32.mrb[0].mxu0
    %v1566 = vadd.f32 %v778, %v1565
    %v1567 = vpop.f32.mrb[0].mxu0
    %v1568 = vadd.f32 %v774, %v1567
    %v1569 = vpop.f32.mrb[0].mxu0
    %v1570 = vadd.f32 %v778, %v1569
    %1571 = vmatprep.mubr.bf16.mxu0 %v630
    %1572 = vmatmul.mubr.bf16.gmra.mrb[0].mxu0 %v629
    %v1573 = vpop.f32.mrb[0].mxu0
    %v1574 = vadd.f32 %v774, %v1573
    %v1575 = vpop.f32.mrb[0].mxu0
    %v1576 = vadd.f32 %v778, %v1575
    %v1577 = vpop.f32.mrb[0].mxu0
    %v1578 = vadd.f32 %v774, %v1577
    %v1579 = vpop.f32.mrb[0].mxu0
    %v1580 = vadd.f32 %v778, %v1579
    %1581 = vdwg.mxu0
    %1582 = vmatprep.subr.bf16.mxu0 %v1234
    %1583 = vmatpush1.bf16.msra.mxu0 %v1233
    %1584 = vmatprep.subr.bf16.mxu0 %v1238
    %1585 = vmatpush1.bf16.msra.mxu0 %v1237
    %1586 = vmatprep.subr.bf16.mxu0 %v1242
    %1587 = vmatpush1.bf16.msra.mxu0 %v1241
    %1588 = vmatprep.subr.bf16.mxu0 %v1246
    %1589 = vmatpush1.bf16.msra.mxu0 %v1245
    %1590 = vmatprep.subr.bf16.mxu0 %v1250
    %1591 = vmatpush1.bf16.msra.mxu0 %v1249
    %1592 = vmatprep.subr.bf16.mxu0 %v1254
    %1593 = vmatpush1.bf16.msra.mxu0 %v1253
    %1594 = vmatprep.subr.bf16.mxu0 %v1258
    %1595 = vmatpush1.bf16.msra.mxu0 %v1257
    %1596 = vmatprep.subr.bf16.mxu0 %v1262
    %1597 = vmatpush1.bf16.msra.mxu0 %v1261
    %1598 = vmatprep.subr.bf16.mxu0 %v1266
    %1599 = vmatpush1.bf16.msra.mxu0 %v1265
    %1600 = vmatprep.subr.bf16.mxu0 %v1270
    %1601 = vmatpush1.bf16.msra.mxu0 %v1269
    %1602 = vmatprep.subr.bf16.mxu0 %v1274
    %1603 = vmatpush1.bf16.msra.mxu0 %v1273
    %1604 = vmatprep.subr.bf16.mxu0 %v1278
    %1605 = vmatpush1.bf16.msra.mxu0 %v1277
    %1606 = vmatprep.subr.bf16.mxu0 %v1282
    %1607 = vmatpush1.bf16.msra.mxu0 %v1281
    %1608 = vmatprep.subr.bf16.mxu0 %v1286
    %1609 = vmatpush1.bf16.msra.mxu0 %v1285
    %1610 = vmatprep.subr.bf16.mxu0 %v1290
    %1611 = vmatpush1.bf16.msra.mxu0 %v1289
    %1612 = vmatprep.subr.bf16.mxu0 %v1294
    %1613 = vmatpush1.bf16.msra.mxu0 %v1293
    %1614 = vmatprep.mubr.bf16.mxu0 %v628
    %1615 = vmatmul.mubr.bf16.gmra.mrb[0].mxu0 %v627
    %v1616 = vpop.f32.mrb[0].mxu0
    %v1617 = vadd.f32 %v1564, %v1616
    %v1618 = vpop.f32.mrb[0].mxu0
    %v1619 = vadd.f32 %v1566, %v1618
    %v1620 = vpop.f32.mrb[0].mxu0
    %v1621 = vadd.f32 %v1568, %v1620
    %v1622 = vpop.f32.mrb[0].mxu0
    %v1623 = vadd.f32 %v1570, %v1622
    %1624 = vmatprep.mubr.bf16.mxu0 %v632
    %1625 = vmatmul.mubr.bf16.gmra.mrb[0].mxu0 %v631
    %v1626 = vpop.f32.mrb[0].mxu0
    %v1627 = vadd.f32 %v1574, %v1626
    %v1628 = vpop.f32.mrb[0].mxu0
    %v1629 = vadd.f32 %v1576, %v1628
    %v1630 = vpop.f32.mrb[0].mxu0
    %v1631 = vadd.f32 %v1578, %v1630
    %v1632 = vpop.f32.mrb[0].mxu0
    %v1633 = vadd.f32 %v1580, %v1632
    %1634 = vdwg.mxu0
    %v1635 = vmax.f32 %v1511, 0.0
    %v1636 = vmax.f32 %v1513, 0.0
    %v1637 = vmax.f32 %v1617, 0.0
    %v1638 = vmax.f32 %v1619, 0.0
    %v1639 = vmax.f32 %v1515, 0.0
    %v1640 = vmax.f32 %v1517, 0.0
    %v1641 = vmax.f32 %v1621, 0.0
    %v1642 = vmax.f32 %v1623, 0.0
    %v1643 = vmax.f32 %v1521, 0.0
    %v1644 = vmax.f32 %v1523, 0.0
    %v1645 = vmax.f32 %v1627, 0.0
    %v1646 = vmax.f32 %v1629, 0.0
    %v1647 = vmax.f32 %v1525, 0.0
    %v1648 = vmax.f32 %v1527, 0.0
    %v1649 = vmax.f32 %v1631, 0.0
    %v1650 = vmax.f32 %v1633, 0.0
    %v1651 = vrot.slane %v1635, 7
    %v1652 = vrot.slane %v1636, 7
    %v1653 = vrot.slane %v1637, 7
    %v1654 = vrot.slane %v1638, 7
    %v1655 = vrot.slane %v1639, 7
    %v1656 = vrot.slane %v1640, 7
    %v1657 = vrot.slane %v1641, 7
    %v1658 = vrot.slane %v1642, 7
    %v1659 = vrot.slane %v1643, 7
    %v1660 = vrot.slane %v1644, 7
    %v1661 = vrot.slane %v1645, 7
    %v1662 = vrot.slane %v1646, 7
    %v1663 = vrot.slane %v1647, 7
    %v1664 = vrot.slane %v1648, 7
    %v1665 = vrot.slane %v1649, 7
    %v1666 = vrot.slane %v1650, 7
    %v1667 = vsel %vm140, %v1659, %v1663
    %v1668 = vsel %vm140, %v1660, %v1664
    %v1669 = vsel %vm140, %v1661, %v1665
    %v1670 = vsel %vm140, %v1662, %v1666
    %v1671 = vsel %vm140, %v1655, %v1659
    %v1672 = vsel %vm140, %v1656, %v1660
    %v1673 = vsel %vm140, %v1657, %v1661
    %v1674 = vsel %vm140, %v1658, %v1662
    %v1675 = vsel %vm140, %v1651, %v1655
    %v1676 = vsel %vm140, %v1652, %v1656
    %v1677 = vsel %vm140, %v1653, %v1657
    %v1678 = vsel %vm140, %v1654, %v1658
    %v1679 = vsel %vm140, %v1663, %v1651
    %v1680 = vsel %vm140, %v1664, %v1652
    %v1681 = vsel %vm140, %v1665, %v1653
    %v1682 = vsel %vm140, %v1666, %v1654
    %v1683 = vmul.f32 %v1679, %v116
    %v1684 = vmul.f32 %v1680, %v116
    %v1685 = vmul.f32 %v1681, %v116
    %v1686 = vmul.f32 %v1682, %v116
    %v1687 = vmul.f32 %v1675, %v117
    %v1688 = vmul.f32 %v1676, %v117
    %v1689 = vmul.f32 %v1677, %v117
    %v1690 = vmul.f32 %v1678, %v117
    %v1691 = vmul.f32 %v1671, %v118
    %v1692 = vmul.f32 %v1672, %v118
    %v1693 = vmul.f32 %v1673, %v118
    %v1694 = vmul.f32 %v1674, %v118
    %v1695 = vmul.f32 %v1667, %v119
    %v1696 = vmul.f32 %v1668, %v119
    %v1697 = vmul.f32 %v1669, %v119
    %v1698 = vmul.f32 %v1670, %v119
    %v1699 = vrot.slane %v1635, 1
    %v1700 = vrot.slane %v1636, 1
    %v1701 = vrot.slane %v1637, 1
    %v1702 = vrot.slane %v1638, 1
    %v1703 = vrot.slane %v1639, 1
    %v1704 = vrot.slane %v1640, 1
    %v1705 = vrot.slane %v1641, 1
    %v1706 = vrot.slane %v1642, 1
    %v1707 = vrot.slane %v1643, 1
    %v1708 = vrot.slane %v1644, 1
    %v1709 = vrot.slane %v1645, 1
    %v1710 = vrot.slane %v1646, 1
    %v1711 = vrot.slane %v1647, 1
    %v1712 = vrot.slane %v1648, 1
    %v1713 = vrot.slane %v1649, 1
    %v1714 = vrot.slane %v1650, 1
    %v1715 = vsel %vm153, %v1707, %v1711
    %v1716 = vsel %vm153, %v1708, %v1712
    %v1717 = vsel %vm153, %v1709, %v1713
    %v1718 = vsel %vm153, %v1710, %v1714
    %v1719 = vsel %vm153, %v1703, %v1707
    %v1720 = vsel %vm153, %v1704, %v1708
    %v1721 = vsel %vm153, %v1705, %v1709
    %v1722 = vsel %vm153, %v1706, %v1710
    %v1723 = vsel %vm153, %v1699, %v1703
    %v1724 = vsel %vm153, %v1700, %v1704
    %v1725 = vsel %vm153, %v1701, %v1705
    %v1726 = vsel %vm153, %v1702, %v1706
    %v1727 = vsel %vm153, %v1711, %v1699
    %v1728 = vsel %vm153, %v1712, %v1700
    %v1729 = vsel %vm153, %v1713, %v1701
    %v1730 = vsel %vm153, %v1714, %v1702
    %v1731 = vmul.f32 %v1723, %v128
    %v1732 = vmul.f32 %v1724, %v128
    %v1733 = vmul.f32 %v1725, %v128
    %v1734 = vmul.f32 %v1726, %v128
    %v1735 = vmul.f32 %v1719, %v129
    %v1736 = vmul.f32 %v1720, %v129
    %v1737 = vmul.f32 %v1721, %v129
    %v1738 = vmul.f32 %v1722, %v129
    %v1739 = vmul.f32 %v1715, %v130
    %v1740 = vmul.f32 %v1716, %v130
    %v1741 = vmul.f32 %v1717, %v130
    %v1742 = vmul.f32 %v1718, %v130
    %v1743 = vmul.f32 %v1727, %v131
    %v1744 = vmul.f32 %v1728, %v131
    %v1745 = vmul.f32 %v1729, %v131
    %v1746 = vmul.f32 %v1730, %v131
    %v1747 = vpack.c.bf16 %v1687, %v1683
    %v1748 = vpack.c.bf16 %v1688, %v1684
    %v1749 = vpack.c.bf16 %v1689, %v1685
    %v1750 = vpack.c.bf16 %v1690, %v1686
    %v1751 = vpack.c.bf16 %v1639, %v1635
    %v1752 = vpack.c.bf16 %v1640, %v1636
    %v1753 = vpack.c.bf16 %v1641, %v1637
    %v1754 = vpack.c.bf16 %v1642, %v1638
    %v1755 = vpack.c.bf16 %v1735, %v1731
    %v1756 = vpack.c.bf16 %v1736, %v1732
    %v1757 = vpack.c.bf16 %v1737, %v1733
    %v1758 = vpack.c.bf16 %v1738, %v1734
    %v1759 = vpack.c.bf16 %v1695, %v1691
    %v1760 = vpack.c.bf16 %v1696, %v1692
    %v1761 = vpack.c.bf16 %v1697, %v1693
    %v1762 = vpack.c.bf16 %v1698, %v1694
    %v1763 = vpack.c.bf16 %v1647, %v1643
    %v1764 = vpack.c.bf16 %v1648, %v1644
    %v1765 = vpack.c.bf16 %v1649, %v1645
    %v1766 = vpack.c.bf16 %v1650, %v1646
    %v1767 = vpack.c.bf16 %v1743, %v1739
    %v1768 = vpack.c.bf16 %v1744, %v1740
    %v1769 = vpack.c.bf16 %v1745, %v1741
    %v1770 = vpack.c.bf16 %v1746, %v1742
    %v1771 = vld [vmem:[#allocation4] sm:$0xf]
    %v1772 = vld [vmem:[#allocation4 + $0x4] sm:$0xf]
    %v1773 = vld [vmem:[#allocation4 + $0x8] sm:$0xf]
    %v1774 = vld [vmem:[#allocation4 + $0xc] sm:$0xf]
    %v1775 = vld [vmem:[#allocation4 + $0x10] sm:$0xf]
    %v1776 = vld [vmem:[#allocation4 + $0x14] sm:$0xf]
    %v1777 = vld [vmem:[#allocation4 + $0x18] sm:$0xf]
    %v1778 = vld [vmem:[#allocation4 + $0x1c] sm:$0xf]
    %v1779 = vld [vmem:[#allocation4 + $0x20] sm:$0xf]
    %v1780 = vld [vmem:[#allocation4 + $0x24] sm:$0xf]
    %v1781 = vld [vmem:[#allocation4 + $0x28] sm:$0xf]
    %v1782 = vld [vmem:[#allocation4 + $0x2c] sm:$0xf]
    %v1783 = vld [vmem:[#allocation4 + $0x30] sm:$0xf]
    %v1784 = vld [vmem:[#allocation4 + $0x34] sm:$0xf]
    %v1785 = vld [vmem:[#allocation4 + $0x38] sm:$0xf]
    %v1786 = vld [vmem:[#allocation4 + $0x3c] sm:$0xf]
    %v1787 = vld [vmem:[#allocation4 + $0x40] sm:$0xf]
    %v1788 = vld [vmem:[#allocation4 + $0x44] sm:$0xf]
    %v1789 = vld [vmem:[#allocation4 + $0x48] sm:$0xf]
    %v1790 = vld [vmem:[#allocation4 + $0x4c] sm:$0xf]
    %v1791 = vld [vmem:[#allocation4 + $0x50] sm:$0xf]
    %v1792 = vld [vmem:[#allocation4 + $0x54] sm:$0xf]
    %v1793 = vld [vmem:[#allocation4 + $0x58] sm:$0xf]
    %v1794 = vld [vmem:[#allocation4 + $0x5c] sm:$0xf]
    %v1795 = vld [vmem:[#allocation4 + $0x60] sm:$0xf]
    %v1796 = vld [vmem:[#allocation4 + $0x64] sm:$0xf]
    %v1797 = vld [vmem:[#allocation4 + $0x68] sm:$0xf]
    %v1798 = vld [vmem:[#allocation4 + $0x6c] sm:$0xf]
    %v1799 = vld [vmem:[#allocation4 + $0x70] sm:$0xf]
    %v1800 = vld [vmem:[#allocation4 + $0x74] sm:$0xf]
    %v1801 = vld [vmem:[#allocation4 + $0x78] sm:$0xf]
    %v1802 = vld [vmem:[#allocation4 + $0x7c] sm:$0xf]
    %v1803 = vld [vmem:[#allocation4 + $0x80] sm:$0xf]
    %v1804 = vld [vmem:[#allocation4 + $0x84] sm:$0xf]
    %v1805 = vld [vmem:[#allocation4 + $0x88] sm:$0xf]
    %v1806 = vld [vmem:[#allocation4 + $0x8c] sm:$0xf]
    %v1807 = vld [vmem:[#allocation4 + $0x90] sm:$0xf]
    %v1808 = vld [vmem:[#allocation4 + $0x94] sm:$0xf]
    %v1809 = vld [vmem:[#allocation4 + $0x98] sm:$0xf]
    %v1810 = vld [vmem:[#allocation4 + $0x9c] sm:$0xf]
    %v1811 = vld [vmem:[#allocation4 + $0xa0] sm:$0xf]
    %v1812 = vld [vmem:[#allocation4 + $0xa4] sm:$0xf]
    %v1813 = vld [vmem:[#allocation4 + $0xa8] sm:$0xf]
    %v1814 = vld [vmem:[#allocation4 + $0xac] sm:$0xf]
    %v1815 = vld [vmem:[#allocation4 + $0xb0] sm:$0xf]
    %v1816 = vld [vmem:[#allocation4 + $0xb4] sm:$0xf]
    %v1817 = vld [vmem:[#allocation4 + $0xb8] sm:$0xf]
    %v1818 = vld [vmem:[#allocation4 + $0xbc] sm:$0xf]
    %v1819 = vld [vmem:[#allocation4 + $0xc0] sm:$0xf]
    %v1820 = vld [vmem:[#allocation4 + $0xc4] sm:$0xf]
    %v1821 = vld [vmem:[#allocation4 + $0xc8] sm:$0xf]
    %v1822 = vld [vmem:[#allocation4 + $0xcc] sm:$0xf]
    %v1823 = vld [vmem:[#allocation4 + $0xd0] sm:$0xf]
    %v1824 = vld [vmem:[#allocation4 + $0xd4] sm:$0xf]
    %v1825 = vld [vmem:[#allocation4 + $0xd8] sm:$0xf]
    %v1826 = vld [vmem:[#allocation4 + $0xdc] sm:$0xf]
    %v1827 = vld [vmem:[#allocation4 + $0xe0] sm:$0xf]
    %v1828 = vld [vmem:[#allocation4 + $0xe4] sm:$0xf]
    %v1829 = vld [vmem:[#allocation4 + $0xe8] sm:$0xf]
    %v1830 = vld [vmem:[#allocation4 + $0xec] sm:$0xf]
    %v1831 = vld [vmem:[#allocation4 + $0xf0] sm:$0xf]
    %v1832 = vld [vmem:[#allocation4 + $0xf4] sm:$0xf]
    %v1833 = vld [vmem:[#allocation4 + $0xf8] sm:$0xf]
    %v1834 = vld [vmem:[#allocation4 + $0xfc] sm:$0xf]
    %v1835 = vld [vmem:[#allocation4 + $0x100] sm:$0xf]
    %v1836 = vld [vmem:[#allocation4 + $0x104] sm:$0xf]
    %v1837 = vld [vmem:[#allocation4 + $0x108] sm:$0xf]
    %v1838 = vld [vmem:[#allocation4 + $0x10c] sm:$0xf]
    %v1839 = vld [vmem:[#allocation4 + $0x110] sm:$0xf]
    %v1840 = vld [vmem:[#allocation4 + $0x114] sm:$0xf]
    %v1841 = vld [vmem:[#allocation4 + $0x118] sm:$0xf]
    %v1842 = vld [vmem:[#allocation4 + $0x11c] sm:$0xf]
    %v1843 = vld [vmem:[#allocation4 + $0x120] sm:$0xf]
    %v1844 = vld [vmem:[#allocation4 + $0x124] sm:$0xf]
    %v1845 = vld [vmem:[#allocation4 + $0x128] sm:$0xf]
    %v1846 = vld [vmem:[#allocation4 + $0x12c] sm:$0xf]
    %v1847 = vld [vmem:[#allocation4 + $0x130] sm:$0xf]
    %v1848 = vld [vmem:[#allocation4 + $0x134] sm:$0xf]
    %v1849 = vld [vmem:[#allocation4 + $0x138] sm:$0xf]
    %v1850 = vld [vmem:[#allocation4 + $0x13c] sm:$0xf]
    %v1851 = vld [vmem:[#allocation4 + $0x140] sm:$0xf]
    %v1852 = vld [vmem:[#allocation4 + $0x144] sm:$0xf]
    %v1853 = vld [vmem:[#allocation4 + $0x148] sm:$0xf]
    %v1854 = vld [vmem:[#allocation4 + $0x14c] sm:$0xf]
    %v1855 = vld [vmem:[#allocation4 + $0x150] sm:$0xf]
    %v1856 = vld [vmem:[#allocation4 + $0x154] sm:$0xf]
    %v1857 = vld [vmem:[#allocation4 + $0x158] sm:$0xf]
    %v1858 = vld [vmem:[#allocation4 + $0x15c] sm:$0xf]
    %v1859 = vld [vmem:[#allocation4 + $0x160] sm:$0xf]
    %v1860 = vld [vmem:[#allocation4 + $0x164] sm:$0xf]
    %v1861 = vld [vmem:[#allocation4 + $0x168] sm:$0xf]
    %v1862 = vld [vmem:[#allocation4 + $0x16c] sm:$0xf]
    %v1863 = vld [vmem:[#allocation4 + $0x170] sm:$0xf]
    %v1864 = vld [vmem:[#allocation4 + $0x174] sm:$0xf]
    %v1865 = vld [vmem:[#allocation4 + $0x178] sm:$0xf]
    %v1866 = vld [vmem:[#allocation4 + $0x17c] sm:$0xf]
    %v1867 = vld [vmem:[#allocation4 + $0x180] sm:$0xf]
    %v1868 = vld [vmem:[#allocation4 + $0x184] sm:$0xf]
    %v1869 = vld [vmem:[#allocation4 + $0x188] sm:$0xf]
    %v1870 = vld [vmem:[#allocation4 + $0x18c] sm:$0xf]
    %v1871 = vld [vmem:[#allocation4 + $0x190] sm:$0xf]
    %v1872 = vld [vmem:[#allocation4 + $0x194] sm:$0xf]
    %v1873 = vld [vmem:[#allocation4 + $0x198] sm:$0xf]
    %v1874 = vld [vmem:[#allocation4 + $0x19c] sm:$0xf]
    %v1875 = vld [vmem:[#allocation4 + $0x1a0] sm:$0xf]
    %v1876 = vld [vmem:[#allocation4 + $0x1a4] sm:$0xf]
    %v1877 = vld [vmem:[#allocation4 + $0x1a8] sm:$0xf]
    %v1878 = vld [vmem:[#allocation4 + $0x1ac] sm:$0xf]
    %v1879 = vld [vmem:[#allocation4 + $0x1b0] sm:$0xf]
    %v1880 = vld [vmem:[#allocation4 + $0x1b4] sm:$0xf]
    %v1881 = vld [vmem:[#allocation4 + $0x1b8] sm:$0xf]
    %v1882 = vld [vmem:[#allocation4 + $0x1bc] sm:$0xf]
    %v1883 = vld [vmem:[#allocation4 + $0x1c0] sm:$0xf]
    %v1884 = vld [vmem:[#allocation4 + $0x1c4] sm:$0xf]
    %v1885 = vld [vmem:[#allocation4 + $0x1c8] sm:$0xf]
    %v1886 = vld [vmem:[#allocation4 + $0x1cc] sm:$0xf]
    %v1887 = vld [vmem:[#allocation4 + $0x1d0] sm:$0xf]
    %v1888 = vld [vmem:[#allocation4 + $0x1d4] sm:$0xf]
    %v1889 = vld [vmem:[#allocation4 + $0x1d8] sm:$0xf]
    %v1890 = vld [vmem:[#allocation4 + $0x1dc] sm:$0xf]
    %v1891 = vld [vmem:[#allocation4 + $0x1e0] sm:$0xf]
    %v1892 = vld [vmem:[#allocation4 + $0x1e4] sm:$0xf]
    %v1893 = vld [vmem:[#allocation4 + $0x1e8] sm:$0xf]
    %v1894 = vld [vmem:[#allocation4 + $0x1ec] sm:$0xf]
    %v1895 = vld [vmem:[#allocation4 + $0x1f0] sm:$0xf]
    %v1896 = vld [vmem:[#allocation4 + $0x1f4] sm:$0xf]
    %v1897 = vld [vmem:[#allocation4 + $0x1f8] sm:$0xf]
    %v1898 = vld [vmem:[#allocation4 + $0x1fc] sm:$0xf]
    %v1899 = vld [vmem:[#allocation4 + $0x200] sm:$0xf]
    %v1900 = vld [vmem:[#allocation4 + $0x204] sm:$0xf]
    %v1901 = vld [vmem:[#allocation4 + $0x208] sm:$0xf]
    %v1902 = vld [vmem:[#allocation4 + $0x20c] sm:$0xf]
    %v1903 = vld [vmem:[#allocation4 + $0x210] sm:$0xf]
    %v1904 = vld [vmem:[#allocation4 + $0x214] sm:$0xf]
    %v1905 = vld [vmem:[#allocation4 + $0x218] sm:$0xf]
    %v1906 = vld [vmem:[#allocation4 + $0x21c] sm:$0xf]
    %v1907 = vld [vmem:[#allocation4 + $0x220] sm:$0xf]
    %v1908 = vld [vmem:[#allocation4 + $0x224] sm:$0xf]
    %v1909 = vld [vmem:[#allocation4 + $0x228] sm:$0xf]
    %v1910 = vld [vmem:[#allocation4 + $0x22c] sm:$0xf]
    %v1911 = vld [vmem:[#allocation4 + $0x230] sm:$0xf]
    %v1912 = vld [vmem:[#allocation4 + $0x234] sm:$0xf]
    %v1913 = vld [vmem:[#allocation4 + $0x238] sm:$0xf]
    %v1914 = vld [vmem:[#allocation4 + $0x23c] sm:$0xf]
    %v1915 = vld [vmem:[#allocation4 + $0x240] sm:$0xf]
    %v1916 = vld [vmem:[#allocation4 + $0x244] sm:$0xf]
    %v1917 = vld [vmem:[#allocation4 + $0x248] sm:$0xf]
    %v1918 = vld [vmem:[#allocation4 + $0x24c] sm:$0xf]
    %v1919 = vld [vmem:[#allocation4 + $0x250] sm:$0xf]
    %v1920 = vld [vmem:[#allocation4 + $0x254] sm:$0xf]
    %v1921 = vld [vmem:[#allocation4 + $0x258] sm:$0xf]
    %v1922 = vld [vmem:[#allocation4 + $0x25c] sm:$0xf]
    %v1923 = vld [vmem:[#allocation4 + $0x260] sm:$0xf]
    %v1924 = vld [vmem:[#allocation4 + $0x264] sm:$0xf]
    %v1925 = vld [vmem:[#allocation4 + $0x268] sm:$0xf]
    %v1926 = vld [vmem:[#allocation4 + $0x26c] sm:$0xf]
    %v1927 = vld [vmem:[#allocation4 + $0x270] sm:$0xf]
    %v1928 = vld [vmem:[#allocation4 + $0x274] sm:$0xf]
    %v1929 = vld [vmem:[#allocation4 + $0x278] sm:$0xf]
    %v1930 = vld [vmem:[#allocation4 + $0x27c] sm:$0xf]
    %v1931 = vld [vmem:[#allocation4 + $0x280] sm:$0xf]
    %v1932 = vld [vmem:[#allocation4 + $0x284] sm:$0xf]
    %v1933 = vld [vmem:[#allocation4 + $0x288] sm:$0xf]
    %v1934 = vld [vmem:[#allocation4 + $0x28c] sm:$0xf]
    %v1935 = vld [vmem:[#allocation4 + $0x290] sm:$0xf]
    %v1936 = vld [vmem:[#allocation4 + $0x294] sm:$0xf]
    %v1937 = vld [vmem:[#allocation4 + $0x298] sm:$0xf]
    %v1938 = vld [vmem:[#allocation4 + $0x29c] sm:$0xf]
    %v1939 = vld [vmem:[#allocation4 + $0x2a0] sm:$0xf]
    %v1940 = vld [vmem:[#allocation4 + $0x2a4] sm:$0xf]
    %v1941 = vld [vmem:[#allocation4 + $0x2a8] sm:$0xf]
    %v1942 = vld [vmem:[#allocation4 + $0x2ac] sm:$0xf]
    %v1943 = vld [vmem:[#allocation4 + $0x2b0] sm:$0xf]
    %v1944 = vld [vmem:[#allocation4 + $0x2b4] sm:$0xf]
    %v1945 = vld [vmem:[#allocation4 + $0x2b8] sm:$0xf]
    %v1946 = vld [vmem:[#allocation4 + $0x2bc] sm:$0xf]
    %v1947 = vld [vmem:[#allocation4 + $0x2c0] sm:$0xf]
    %v1948 = vld [vmem:[#allocation4 + $0x2c4] sm:$0xf]
    %v1949 = vld [vmem:[#allocation4 + $0x2c8] sm:$0xf]
    %v1950 = vld [vmem:[#allocation4 + $0x2cc] sm:$0xf]
    %v1951 = vld [vmem:[#allocation4 + $0x2d0] sm:$0xf]
    %v1952 = vld [vmem:[#allocation4 + $0x2d4] sm:$0xf]
    %v1953 = vld [vmem:[#allocation4 + $0x2d8] sm:$0xf]
    %v1954 = vld [vmem:[#allocation4 + $0x2dc] sm:$0xf]
    %v1955 = vld [vmem:[#allocation4 + $0x2e0] sm:$0xf]
    %v1956 = vld [vmem:[#allocation4 + $0x2e4] sm:$0xf]
    %v1957 = vld [vmem:[#allocation4 + $0x2e8] sm:$0xf]
    %v1958 = vld [vmem:[#allocation4 + $0x2ec] sm:$0xf]
    %v1959 = vld [vmem:[#allocation4 + $0x2f0] sm:$0xf]
    %v1960 = vld [vmem:[#allocation4 + $0x2f4] sm:$0xf]
    %v1961 = vld [vmem:[#allocation4 + $0x2f8] sm:$0xf]
    %v1962 = vld [vmem:[#allocation4 + $0x2fc] sm:$0xf]
    %v1963 = vld [vmem:[%s6] sm:$0x1]
    %v1965 = vlaneseq
    %v1966 = vshrl.u32 %v1965, 7
    %v1967 = vsub.s32 0, %v1966
    %v1968 = vrot.slane %v1963, %v1967
    %v2162 = vunpack.c.l.b16 %v1771
    %v2163 = vunpack.c.l.b16 %v1772
    %v2164 = vunpack.c.l.b16 %v1773
    %v2165 = vunpack.c.l.b16 %v1774
    %v2166 = vunpack.c.l.b16 %v1775
    %v2167 = vunpack.c.l.b16 %v1776
    %v2168 = vunpack.c.l.b16 %v1777
    %v2169 = vunpack.c.l.b16 %v1778
    %v2170 = vunpack.c.l.b16 %v1779
    %v2171 = vunpack.c.l.b16 %v1780
    %v2172 = vunpack.c.l.b16 %v1781
    %v2173 = vunpack.c.l.b16 %v1782
    %v2174 = vunpack.c.l.b16 %v1783
    %v2175 = vunpack.c.l.b16 %v1784
    %v2176 = vunpack.c.l.b16 %v1785
    %v2177 = vunpack.c.l.b16 %v1786
    %v2178 = vunpack.c.l.b16 %v1787
    %v2179 = vunpack.c.l.b16 %v1788
    %v2180 = vunpack.c.l.b16 %v1789
    %v2181 = vunpack.c.l.b16 %v1790
    %v2182 = vunpack.c.l.b16 %v1791
    %v2183 = vunpack.c.l.b16 %v1792
    %v2184 = vunpack.c.l.b16 %v1793
    %v2185 = vunpack.c.l.b16 %v1794
    %v2186 = vunpack.c.l.b16 %v1795
    %v2187 = vunpack.c.l.b16 %v1796
    %v2188 = vunpack.c.l.b16 %v1797
    %v2189 = vunpack.c.l.b16 %v1798
    %v2190 = vunpack.c.l.b16 %v1799
    %v2191 = vunpack.c.l.b16 %v1800
    %v2192 = vunpack.c.l.b16 %v1801
    %v2193 = vunpack.c.l.b16 %v1802
    %v2194 = vunpack.c.l.b16 %v1803
    %v2195 = vunpack.c.l.b16 %v1804
    %v2196 = vunpack.c.l.b16 %v1805
    %v2197 = vunpack.c.l.b16 %v1806
    %v2198 = vunpack.c.l.b16 %v1807
    %v2199 = vunpack.c.l.b16 %v1808
    %v2200 = vunpack.c.l.b16 %v1809
    %v2201 = vunpack.c.l.b16 %v1810
    %v2202 = vunpack.c.l.b16 %v1811
    %v2203 = vunpack.c.l.b16 %v1812
    %v2204 = vunpack.c.l.b16 %v1813
    %v2205 = vunpack.c.l.b16 %v1814
    %v2206 = vunpack.c.l.b16 %v1815
    %v2207 = vunpack.c.l.b16 %v1816
    %v2208 = vunpack.c.l.b16 %v1817
    %v2209 = vunpack.c.l.b16 %v1818
    %v2210 = vunpack.c.l.b16 %v1819
    %v2211 = vunpack.c.l.b16 %v1820
    %v2212 = vunpack.c.l.b16 %v1821
    %v2213 = vunpack.c.l.b16 %v1822
    %v2214 = vunpack.c.l.b16 %v1823
    %v2215 = vunpack.c.l.b16 %v1824
    %v2216 = vunpack.c.l.b16 %v1825
    %v2217 = vunpack.c.l.b16 %v1826
    %v2218 = vunpack.c.l.b16 %v1827
    %v2219 = vunpack.c.l.b16 %v1828
    %v2220 = vunpack.c.l.b16 %v1829
    %v2221 = vunpack.c.l.b16 %v1830
    %v2222 = vunpack.c.l.b16 %v1831
    %v2223 = vunpack.c.l.b16 %v1832
    %v2224 = vunpack.c.l.b16 %v1833
    %v2225 = vunpack.c.l.b16 %v1834
    %v2226 = vunpack.c.l.b16 %v1835
    %v2227 = vunpack.c.l.b16 %v1836
    %v2228 = vunpack.c.l.b16 %v1837
    %v2229 = vunpack.c.l.b16 %v1838
    %v2230 = vunpack.c.l.b16 %v1839
    %v2231 = vunpack.c.l.b16 %v1840
    %v2232 = vunpack.c.l.b16 %v1841
    %v2233 = vunpack.c.l.b16 %v1842
    %v2234 = vunpack.c.l.b16 %v1843
    %v2235 = vunpack.c.l.b16 %v1844
    %v2236 = vunpack.c.l.b16 %v1845
    %v2237 = vunpack.c.l.b16 %v1846
    %v2238 = vunpack.c.l.b16 %v1847
    %v2239 = vunpack.c.l.b16 %v1848
    %v2240 = vunpack.c.l.b16 %v1849
    %v2241 = vunpack.c.l.b16 %v1850
    %v2242 = vunpack.c.l.b16 %v1851
    %v2243 = vunpack.c.l.b16 %v1852
    %v2244 = vunpack.c.l.b16 %v1853
    %v2245 = vunpack.c.l.b16 %v1854
    %v2246 = vunpack.c.l.b16 %v1855
    %v2247 = vunpack.c.l.b16 %v1856
    %v2248 = vunpack.c.l.b16 %v1857
    %v2249 = vunpack.c.l.b16 %v1858
    %v2250 = vunpack.c.l.b16 %v1859
    %v2251 = vunpack.c.l.b16 %v1860
    %v2252 = vunpack.c.l.b16 %v1861
    %v2253 = vunpack.c.l.b16 %v1862
    %v2254 = vunpack.c.l.b16 %v1863
    %v2255 = vunpack.c.l.b16 %v1864
    %v2256 = vunpack.c.l.b16 %v1865
    %v2257 = vunpack.c.l.b16 %v1866
    %v2258 = vunpack.c.l.b16 %v1867
    %v2259 = vunpack.c.l.b16 %v1868
    %v2260 = vunpack.c.l.b16 %v1869
    %v2261 = vunpack.c.l.b16 %v1870
    %v2262 = vunpack.c.l.b16 %v1871
    %v2263 = vunpack.c.l.b16 %v1872
    %v2264 = vunpack.c.l.b16 %v1873
    %v2265 = vunpack.c.l.b16 %v1874
    %v2266 = vunpack.c.l.b16 %v1875
    %v2267 = vunpack.c.l.b16 %v1876
    %v2268 = vunpack.c.l.b16 %v1877
    %v2269 = vunpack.c.l.b16 %v1878
    %v2270 = vunpack.c.l.b16 %v1879
    %v2271 = vunpack.c.l.b16 %v1880
    %v2272 = vunpack.c.l.b16 %v1881
    %v2273 = vunpack.c.l.b16 %v1882
    %v2274 = vunpack.c.l.b16 %v1883
    %v2275 = vunpack.c.l.b16 %v1884
    %v2276 = vunpack.c.l.b16 %v1885
    %v2277 = vunpack.c.l.b16 %v1886
    %v2278 = vunpack.c.l.b16 %v1887
    %v2279 = vunpack.c.l.b16 %v1888
    %v2280 = vunpack.c.l.b16 %v1889
    %v2281 = vunpack.c.l.b16 %v1890
    %v2282 = vunpack.c.l.b16 %v1891
    %v2283 = vunpack.c.l.b16 %v1892
    %v2284 = vunpack.c.l.b16 %v1893
    %v2285 = vunpack.c.l.b16 %v1894
    %v2286 = vunpack.c.l.b16 %v1895
    %v2287 = vunpack.c.l.b16 %v1896
    %v2288 = vunpack.c.l.b16 %v1897
    %v2289 = vunpack.c.l.b16 %v1898
    %v2290 = vunpack.c.l.b16 %v1899
    %v2291 = vunpack.c.l.b16 %v1900
    %v2292 = vunpack.c.l.b16 %v1901
    %v2293 = vunpack.c.l.b16 %v1902
    %v2294 = vunpack.c.l.b16 %v1903
    %v2295 = vunpack.c.l.b16 %v1904
    %v2296 = vunpack.c.l.b16 %v1905
    %v2297 = vunpack.c.l.b16 %v1906
    %v2298 = vunpack.c.l.b16 %v1907
    %v2299 = vunpack.c.l.b16 %v1908
    %v2300 = vunpack.c.l.b16 %v1909
    %v2301 = vunpack.c.l.b16 %v1910
    %v2302 = vunpack.c.l.b16 %v1911
    %v2303 = vunpack.c.l.b16 %v1912
    %v2304 = vunpack.c.l.b16 %v1913
    %v2305 = vunpack.c.l.b16 %v1914
    %v2306 = vunpack.c.l.b16 %v1915
    %v2307 = vunpack.c.l.b16 %v1916
    %v2308 = vunpack.c.l.b16 %v1917
    %v2309 = vunpack.c.l.b16 %v1918
    %v2310 = vunpack.c.l.b16 %v1919
    %v2311 = vunpack.c.l.b16 %v1920
    %v2312 = vunpack.c.l.b16 %v1921
    %v2313 = vunpack.c.l.b16 %v1922
    %v2314 = vunpack.c.l.b16 %v1923
    %v2315 = vunpack.c.l.b16 %v1924
    %v2316 = vunpack.c.l.b16 %v1925
    %v2317 = vunpack.c.l.b16 %v1926
    %v2318 = vunpack.c.l.b16 %v1927
    %v2319 = vunpack.c.l.b16 %v1928
    %v2320 = vunpack.c.l.b16 %v1929
    %v2321 = vunpack.c.l.b16 %v1930
    %v2322 = vunpack.c.l.b16 %v1931
    %v2323 = vunpack.c.l.b16 %v1932
    %v2324 = vunpack.c.l.b16 %v1933
    %v2325 = vunpack.c.l.b16 %v1934
    %v2326 = vunpack.c.l.b16 %v1935
    %v2327 = vunpack.c.l.b16 %v1936
    %v2328 = vunpack.c.l.b16 %v1937
    %v2329 = vunpack.c.l.b16 %v1938
    %v2330 = vunpack.c.l.b16 %v1939
    %v2331 = vunpack.c.l.b16 %v1940
    %v2332 = vunpack.c.l.b16 %v1941
    %v2333 = vunpack.c.l.b16 %v1942
    %v2334 = vunpack.c.l.b16 %v1943
    %v2335 = vunpack.c.l.b16 %v1944
    %v2336 = vunpack.c.l.b16 %v1945
    %v2337 = vunpack.c.l.b16 %v1946
    %v2338 = vunpack.c.l.b16 %v1947
    %v2339 = vunpack.c.l.b16 %v1948
    %v2340 = vunpack.c.l.b16 %v1949
    %v2341 = vunpack.c.l.b16 %v1950
    %v2342 = vunpack.c.l.b16 %v1951
    %v2343 = vunpack.c.l.b16 %v1952
    %v2344 = vunpack.c.l.b16 %v1953
    %v2345 = vunpack.c.l.b16 %v1954
    %v2346 = vunpack.c.l.b16 %v1955
    %v2347 = vunpack.c.l.b16 %v1956
    %v2348 = vunpack.c.l.b16 %v1957
    %v2349 = vunpack.c.l.b16 %v1958
    %v2350 = vunpack.c.l.b16 %v1959
    %v2351 = vunpack.c.l.b16 %v1960
    %v2352 = vunpack.c.l.b16 %v1961
    %v2353 = vunpack.c.l.b16 %v1962
    %v2354 = vpack.c.b16 %v2163, %v2162
    %v2355 = vpack.c.b16 %v2165, %v2164
    %v2356 = vpack.c.b16 %v2167, %v2166
    %v2357 = vpack.c.b16 %v2169, %v2168
    %v2358 = vpack.c.b16 %v2171, %v2170
    %v2359 = vpack.c.b16 %v2173, %v2172
    %v2360 = vpack.c.b16 %v2175, %v2174
    %v2361 = vpack.c.b16 %v2177, %v2176
    %v2362 = vpack.c.b16 %v2179, %v2178
    %v2363 = vpack.c.b16 %v2181, %v2180
    %v2364 = vpack.c.b16 %v2183, %v2182
    %v2365 = vpack.c.b16 %v2185, %v2184
    %v2366 = vpack.c.b16 %v2187, %v2186
    %v2367 = vpack.c.b16 %v2189, %v2188
    %v2368 = vpack.c.b16 %v2191, %v2190
    %v2369 = vpack.c.b16 %v2193, %v2192
    %v2370 = vpack.c.b16 %v2195, %v2194
    %v2371 = vpack.c.b16 %v2197, %v2196
    %v2372 = vpack.c.b16 %v2199, %v2198
    %v2373 = vpack.c.b16 %v2201, %v2200
    %v2374 = vpack.c.b16 %v2203, %v2202
    %v2375 = vpack.c.b16 %v2205, %v2204
    %v2376 = vpack.c.b16 %v2207, %v2206
    %v2377 = vpack.c.b16 %v2209, %v2208
    %v2378 = vpack.c.b16 %v2211, %v2210
    %v2379 = vpack.c.b16 %v2213, %v2212
    %v2380 = vpack.c.b16 %v2215, %v2214
    %v2381 = vpack.c.b16 %v2217, %v2216
    %v2382 = vpack.c.b16 %v2219, %v2218
    %v2383 = vpack.c.b16 %v2221, %v2220
    %v2384 = vpack.c.b16 %v2223, %v2222
    %v2385 = vpack.c.b16 %v2225, %v2224
    %v2386 = vpack.c.b16 %v2227, %v2226
    %v2387 = vpack.c.b16 %v2229, %v2228
    %v2388 = vpack.c.b16 %v2231, %v2230
    %v2389 = vpack.c.b16 %v2233, %v2232
    %v2390 = vpack.c.b16 %v2235, %v2234
    %v2391 = vpack.c.b16 %v2237, %v2236
    %v2392 = vpack.c.b16 %v2239, %v2238
    %v2393 = vpack.c.b16 %v2241, %v2240
    %v2394 = vpack.c.b16 %v2243, %v2242
    %v2395 = vpack.c.b16 %v2245, %v2244
    %v2396 = vpack.c.b16 %v2247, %v2246
    %v2397 = vpack.c.b16 %v2249, %v2248
    %v2398 = vpack.c.b16 %v2251, %v2250
    %v2399 = vpack.c.b16 %v2253, %v2252
    %v2400 = vpack.c.b16 %v2255, %v2254
    %v2401 = vpack.c.b16 %v2257, %v2256
    %v2402 = vpack.c.b16 %v2259, %v2258
    %v2403 = vpack.c.b16 %v2261, %v2260
    %v2404 = vpack.c.b16 %v2263, %v2262
    %v2405 = vpack.c.b16 %v2265, %v2264
    %v2406 = vpack.c.b16 %v2267, %v2266
    %v2407 = vpack.c.b16 %v2269, %v2268
    %v2408 = vpack.c.b16 %v2271, %v2270
    %v2409 = vpack.c.b16 %v2273, %v2272
    %v2410 = vpack.c.b16 %v2275, %v2274
    %v2411 = vpack.c.b16 %v2277, %v2276
    %v2412 = vpack.c.b16 %v2279, %v2278
    %v2413 = vpack.c.b16 %v2281, %v2280
    %v2414 = vpack.c.b16 %v2283, %v2282
    %v2415 = vpack.c.b16 %v2285, %v2284
    %v2416 = vpack.c.b16 %v2287, %v2286
    %v2417 = vpack.c.b16 %v2289, %v2288
    %v2418 = vpack.c.b16 %v2291, %v2290
    %v2419 = vpack.c.b16 %v2293, %v2292
    %v2420 = vpack.c.b16 %v2295, %v2294
    %v2421 = vpack.c.b16 %v2297, %v2296
    %v2422 = vpack.c.b16 %v2299, %v2298
    %v2423 = vpack.c.b16 %v2301, %v2300
    %v2424 = vpack.c.b16 %v2303, %v2302
    %v2425 = vpack.c.b16 %v2305, %v2304
    %v2426 = vpack.c.b16 %v2307, %v2306
    %v2427 = vpack.c.b16 %v2309, %v2308
    %v2428 = vpack.c.b16 %v2311, %v2310
    %v2429 = vpack.c.b16 %v2313, %v2312
    %v2430 = vpack.c.b16 %v2315, %v2314
    %v2431 = vpack.c.b16 %v2317, %v2316
    %v2432 = vpack.c.b16 %v2319, %v2318
    %v2433 = vpack.c.b16 %v2321, %v2320
    %v2434 = vpack.c.b16 %v2323, %v2322
    %v2435 = vpack.c.b16 %v2325, %v2324
    %v2436 = vpack.c.b16 %v2327, %v2326
    %v2437 = vpack.c.b16 %v2329, %v2328
    %v2438 = vpack.c.b16 %v2331, %v2330
    %v2439 = vpack.c.b16 %v2333, %v2332
    %v2440 = vpack.c.b16 %v2335, %v2334
    %v2441 = vpack.c.b16 %v2337, %v2336
    %v2442 = vpack.c.b16 %v2339, %v2338
    %v2443 = vpack.c.b16 %v2341, %v2340
    %v2444 = vpack.c.b16 %v2343, %v2342
    %v2445 = vpack.c.b16 %v2345, %v2344
    %v2446 = vpack.c.b16 %v2347, %v2346
    %v2447 = vpack.c.b16 %v2349, %v2348
    %v2448 = vpack.c.b16 %v2351, %v2350
    %v2449 = vpack.c.b16 %v2353, %v2352
    %2546 = vmatprep.subr.bf16.mxu0 0
    %2547 = vmatpush1.bf16.msra.mxu0 %v2354
    %2548 = vmatprep.subr.bf16.mxu0 0
    %2549 = vmatpush1.bf16.msra.mxu0 %v2355
    %2550 = vmatprep.subr.bf16.mxu0 0
    %2551 = vmatpush1.bf16.msra.mxu0 %v2356
    %2552 = vmatprep.subr.bf16.mxu0 0
    %2553 = vmatpush1.bf16.msra.mxu0 %v2357
    %2554 = vmatprep.subr.bf16.mxu0 0
    %2555 = vmatpush1.bf16.msra.mxu0 %v2358
    %2556 = vmatprep.subr.bf16.mxu0 0
    %2557 = vmatpush1.bf16.msra.mxu0 %v2359
    %2558 = vmatprep.subr.bf16.mxu0 0
    %2559 = vmatpush1.bf16.msra.mxu0 %v2360
    %2560 = vmatprep.subr.bf16.mxu0 0
    %2561 = vmatpush1.bf16.msra.mxu0 %v2361
    %2562 = vmatprep.subr.bf16.mxu0 0
    %2563 = vmatpush1.bf16.msra.mxu0 %v2362
    %2564 = vmatprep.subr.bf16.mxu0 0
    %2565 = vmatpush1.bf16.msra.mxu0 %v2363
    %2566 = vmatprep.subr.bf16.mxu0 0
    %2567 = vmatpush1.bf16.msra.mxu0 %v2364
    %2568 = vmatprep.subr.bf16.mxu0 0
    %2569 = vmatpush1.bf16.msra.mxu0 %v2365
    %2570 = vmatprep.subr.bf16.mxu0 0
    %2571 = vmatpush1.bf16.msra.mxu0 %v2366
    %2572 = vmatprep.subr.bf16.mxu0 0
    %2573 = vmatpush1.bf16.msra.mxu0 %v2367
    %2574 = vmatprep.subr.bf16.mxu0 0
    %2575 = vmatpush1.bf16.msra.mxu0 %v2368
    %2576 = vmatprep.subr.bf16.mxu0 0
    %2577 = vmatpush1.bf16.msra.mxu0 %v2369
    %2578 = vmatprep.mubr.bf16.mxu0 %v1748
    %2579 = vmatmul.mubr.bf16.gmra.mrb[0].mxu0 %v1747
    %v2580 = vpop.f32.mrb[0].mxu0
    %v2581 = vadd.f32 %v1968, %v2580
    %v2582 = vpop.f32.mrb[0].mxu0
    %v2583 = vpop.f32.mrb[0].mxu0
    %v2584 = vadd.f32 %v1968, %v2583
    %v2585 = vpop.f32.mrb[0].mxu0
    %2586 = vmatprep.mubr.bf16.mxu0 %v1760
    %2587 = vmatmul.mubr.bf16.gmra.mrb[0].mxu0 %v1759
    %v2588 = vpop.f32.mrb[0].mxu0
    %v2589 = vadd.f32 %v1968, %v2588
    %v2590 = vpop.f32.mrb[0].mxu0
    %v2591 = vpop.f32.mrb[0].mxu0
    %v2592 = vadd.f32 %v1968, %v2591
    %v2593 = vpop.f32.mrb[0].mxu0
    %2594 = vdwg.mxu0
    %2595 = vmatprep.subr.bf16.mxu0 0
    %2596 = vmatpush1.bf16.msra.mxu0 %v2370
    %2597 = vmatprep.subr.bf16.mxu0 0
    %2598 = vmatpush1.bf16.msra.mxu0 %v2371
    %2599 = vmatprep.subr.bf16.mxu0 0
    %2600 = vmatpush1.bf16.msra.mxu0 %v2372
    %2601 = vmatprep.subr.bf16.mxu0 0
    %2602 = vmatpush1.bf16.msra.mxu0 %v2373
    %2603 = vmatprep.subr.bf16.mxu0 0
    %2604 = vmatpush1.bf16.msra.mxu0 %v2374
    %2605 = vmatprep.subr.bf16.mxu0 0
    %2606 = vmatpush1.bf16.msra.mxu0 %v2375
    %2607 = vmatprep.subr.bf16.mxu0 0
    %2608 = vmatpush1.bf16.msra.mxu0 %v2376
    %2609 = vmatprep.subr.bf16.mxu0 0
    %2610 = vmatpush1.bf16.msra.mxu0 %v2377
    %2611 = vmatprep.subr.bf16.mxu0 0
    %2612 = vmatpush1.bf16.msra.mxu0 %v2378
    %2613 = vmatprep.subr.bf16.mxu0 0
    %2614 = vmatpush1.bf16.msra.mxu0 %v2379
    %2615 = vmatprep.subr.bf16.mxu0 0
    %2616 = vmatpush1.bf16.msra.mxu0 %v2380
    %2617 = vmatprep.subr.bf16.mxu0 0
    %2618 = vmatpush1.bf16.msra.mxu0 %v2381
    %2619 = vmatprep.subr.bf16.mxu0 0
    %2620 = vmatpush1.bf16.msra.mxu0 %v2382
    %2621 = vmatprep.subr.bf16.mxu0 0
    %2622 = vmatpush1.bf16.msra.mxu0 %v2383
    %2623 = vmatprep.subr.bf16.mxu0 0
    %2624 = vmatpush1.bf16.msra.mxu0 %v2384
    %2625 = vmatprep.subr.bf16.mxu0 0
    %2626 = vmatpush1.bf16.msra.mxu0 %v2385
    %2627 = vmatprep.mubr.bf16.mxu0 %v1750
    %2628 = vmatmul.mubr.bf16.gmra.mrb[0].mxu0 %v1749
    %v2629 = vpop.f32.mrb[0].mxu0
    %v2630 = vadd.f32 %v2581, %v2629
    %v2631 = vpop.f32.mrb[0].mxu0
    %v2632 = vpop.f32.mrb[0].mxu0
    %v2633 = vadd.f32 %v2584, %v2632
    %v2634 = vpop.f32.mrb[0].mxu0
    %2635 = vmatprep.mubr.bf16.mxu0 %v1762
    %2636 = vmatmul.mubr.bf16.gmra.mrb[0].mxu0 %v1761
    %v2637 = vpop.f32.mrb[0].mxu0
    %v2638 = vadd.f32 %v2589, %v2637
    %v2639 = vpop.f32.mrb[0].mxu0
    %v2640 = vpop.f32.mrb[0].mxu0
    %v2641 = vadd.f32 %v2592, %v2640
    %v2642 = vpop.f32.mrb[0].mxu0
    %2643 = vdwg.mxu0
    %2644 = vmatprep.subr.bf16.mxu0 0
    %2645 = vmatpush1.bf16.msra.mxu0 %v2386
    %2646 = vmatprep.subr.bf16.mxu0 0
    %2647 = vmatpush1.bf16.msra.mxu0 %v2387
    %2648 = vmatprep.subr.bf16.mxu0 0
    %2649 = vmatpush1.bf16.msra.mxu0 %v2388
    %2650 = vmatprep.subr.bf16.mxu0 0
    %2651 = vmatpush1.bf16.msra.mxu0 %v2389
    %2652 = vmatprep.subr.bf16.mxu0 0
    %2653 = vmatpush1.bf16.msra.mxu0 %v2390
    %2654 = vmatprep.subr.bf16.mxu0 0
    %2655 = vmatpush1.bf16.msra.mxu0 %v2391
    %2656 = vmatprep.subr.bf16.mxu0 0
    %2657 = vmatpush1.bf16.msra.mxu0 %v2392
    %2658 = vmatprep.subr.bf16.mxu0 0
    %2659 = vmatpush1.bf16.msra.mxu0 %v2393
    %2660 = vmatprep.subr.bf16.mxu0 0
    %2661 = vmatpush1.bf16.msra.mxu0 %v2394
    %2662 = vmatprep.subr.bf16.mxu0 0
    %2663 = vmatpush1.bf16.msra.mxu0 %v2395
    %2664 = vmatprep.subr.bf16.mxu0 0
    %2665 = vmatpush1.bf16.msra.mxu0 %v2396
    %2666 = vmatprep.subr.bf16.mxu0 0
    %2667 = vmatpush1.bf16.msra.mxu0 %v2397
    %2668 = vmatprep.subr.bf16.mxu0 0
    %2669 = vmatpush1.bf16.msra.mxu0 %v2398
    %2670 = vmatprep.subr.bf16.mxu0 0
    %2671 = vmatpush1.bf16.msra.mxu0 %v2399
    %2672 = vmatprep.subr.bf16.mxu0 0
    %2673 = vmatpush1.bf16.msra.mxu0 %v2400
    %2674 = vmatprep.subr.bf16.mxu0 0
    %2675 = vmatpush1.bf16.msra.mxu0 %v2401
    %2676 = vmatprep.mubr.bf16.mxu0 %v1752
    %2677 = vmatmul.mubr.bf16.gmra.mrb[0].mxu0 %v1751
    %v2678 = vpop.f32.mrb[0].mxu0
    %v2679 = vadd.f32 %v2630, %v2678
    %v2680 = vpop.f32.mrb[0].mxu0
    %v2681 = vpop.f32.mrb[0].mxu0
    %v2682 = vadd.f32 %v2633, %v2681
    %v2683 = vpop.f32.mrb[0].mxu0
    %2684 = vmatprep.mubr.bf16.mxu0 %v1764
    %2685 = vmatmul.mubr.bf16.gmra.mrb[0].mxu0 %v1763
    %v2686 = vpop.f32.mrb[0].mxu0
    %v2687 = vadd.f32 %v2638, %v2686
    %v2688 = vpop.f32.mrb[0].mxu0
    %v2689 = vpop.f32.mrb[0].mxu0
    %v2690 = vadd.f32 %v2641, %v2689
    %v2691 = vpop.f32.mrb[0].mxu0
    %2692 = vdwg.mxu0
    %2693 = vmatprep.subr.bf16.mxu0 0
    %2694 = vmatpush1.bf16.msra.mxu0 %v2402
    %2695 = vmatprep.subr.bf16.mxu0 0
    %2696 = vmatpush1.bf16.msra.mxu0 %v2403
    %2697 = vmatprep.subr.bf16.mxu0 0
    %2698 = vmatpush1.bf16.msra.mxu0 %v2404
    %2699 = vmatprep.subr.bf16.mxu0 0
    %2700 = vmatpush1.bf16.msra.mxu0 %v2405
    %2701 = vmatprep.subr.bf16.mxu0 0
    %2702 = vmatpush1.bf16.msra.mxu0 %v2406
    %2703 = vmatprep.subr.bf16.mxu0 0
    %2704 = vmatpush1.bf16.msra.mxu0 %v2407
    %2705 = vmatprep.subr.bf16.mxu0 0
    %2706 = vmatpush1.bf16.msra.mxu0 %v2408
    %2707 = vmatprep.subr.bf16.mxu0 0
    %2708 = vmatpush1.bf16.msra.mxu0 %v2409
    %2709 = vmatprep.subr.bf16.mxu0 0
    %2710 = vmatpush1.bf16.msra.mxu0 %v2410
    %2711 = vmatprep.subr.bf16.mxu0 0
    %2712 = vmatpush1.bf16.msra.mxu0 %v2411
    %2713 = vmatprep.subr.bf16.mxu0 0
    %2714 = vmatpush1.bf16.msra.mxu0 %v2412
    %2715 = vmatprep.subr.bf16.mxu0 0
    %2716 = vmatpush1.bf16.msra.mxu0 %v2413
    %2717 = vmatprep.subr.bf16.mxu0 0
    %2718 = vmatpush1.bf16.msra.mxu0 %v2414
    %2719 = vmatprep.subr.bf16.mxu0 0
    %2720 = vmatpush1.bf16.msra.mxu0 %v2415
    %2721 = vmatprep.subr.bf16.mxu0 0
    %2722 = vmatpush1.bf16.msra.mxu0 %v2416
    %2723 = vmatprep.subr.bf16.mxu0 0
    %2724 = vmatpush1.bf16.msra.mxu0 %v2417
    %2725 = vmatprep.mubr.bf16.mxu0 %v1754
    %2726 = vmatmul.mubr.bf16.gmra.mrb[0].mxu0 %v1753
    %v2727 = vpop.f32.mrb[0].mxu0
    %v2728 = vadd.f32 %v2679, %v2727
    %v2729 = vpop.f32.mrb[0].mxu0
    %v2730 = vpop.f32.mrb[0].mxu0
    %v2731 = vadd.f32 %v2682, %v2730
    %v2732 = vpop.f32.mrb[0].mxu0
    %2733 = vmatprep.mubr.bf16.mxu0 %v1766
    %2734 = vmatmul.mubr.bf16.gmra.mrb[0].mxu0 %v1765
    %v2735 = vpop.f32.mrb[0].mxu0
    %v2736 = vadd.f32 %v2687, %v2735
    %v2737 = vpop.f32.mrb[0].mxu0
    %v2738 = vpop.f32.mrb[0].mxu0
    %v2739 = vadd.f32 %v2690, %v2738
    %v2740 = vpop.f32.mrb[0].mxu0
    %2741 = vdwg.mxu0
    %2742 = vmatprep.subr.bf16.mxu0 0
    %2743 = vmatpush1.bf16.msra.mxu0 %v2418
    %2744 = vmatprep.subr.bf16.mxu0 0
    %2745 = vmatpush1.bf16.msra.mxu0 %v2419
    %2746 = vmatprep.subr.bf16.mxu0 0
    %2747 = vmatpush1.bf16.msra.mxu0 %v2420
    %2748 = vmatprep.subr.bf16.mxu0 0
    %2749 = vmatpush1.bf16.msra.mxu0 %v2421
    %2750 = vmatprep.subr.bf16.mxu0 0
    %2751 = vmatpush1.bf16.msra.mxu0 %v2422
    %2752 = vmatprep.subr.bf16.mxu0 0
    %2753 = vmatpush1.bf16.msra.mxu0 %v2423
    %2754 = vmatprep.subr.bf16.mxu0 0
    %2755 = vmatpush1.bf16.msra.mxu0 %v2424
    %2756 = vmatprep.subr.bf16.mxu0 0
    %2757 = vmatpush1.bf16.msra.mxu0 %v2425
    %2758 = vmatprep.subr.bf16.mxu0 0
    %2759 = vmatpush1.bf16.msra.mxu0 %v2426
    %2760 = vmatprep.subr.bf16.mxu0 0
    %2761 = vmatpush1.bf16.msra.mxu0 %v2427
    %2762 = vmatprep.subr.bf16.mxu0 0
    %2763 = vmatpush1.bf16.msra.mxu0 %v2428
    %2764 = vmatprep.subr.bf16.mxu0 0
    %2765 = vmatpush1.bf16.msra.mxu0 %v2429
    %2766 = vmatprep.subr.bf16.mxu0 0
    %2767 = vmatpush1.bf16.msra.mxu0 %v2430
    %2768 = vmatprep.subr.bf16.mxu0 0
    %2769 = vmatpush1.bf16.msra.mxu0 %v2431
    %2770 = vmatprep.subr.bf16.mxu0 0
    %2771 = vmatpush1.bf16.msra.mxu0 %v2432
    %2772 = vmatprep.subr.bf16.mxu0 0
    %2773 = vmatpush1.bf16.msra.mxu0 %v2433
    %2774 = vmatprep.mubr.bf16.mxu0 %v1756
    %2775 = vmatmul.mubr.bf16.gmra.mrb[0].mxu0 %v1755
    %v2776 = vpop.f32.mrb[0].mxu0
    %v2777 = vadd.f32 %v2728, %v2776
    %v2778 = vpop.f32.mrb[0].mxu0
    %v2779 = vpop.f32.mrb[0].mxu0
    %v2780 = vadd.f32 %v2731, %v2779
    %v2781 = vpop.f32.mrb[0].mxu0
    %2782 = vmatprep.mubr.bf16.mxu0 %v1768
    %2783 = vmatmul.mubr.bf16.gmra.mrb[0].mxu0 %v1767
    %v2784 = vpop.f32.mrb[0].mxu0
    %v2785 = vadd.f32 %v2736, %v2784
    %v2786 = vpop.f32.mrb[0].mxu0
    %v2787 = vpop.f32.mrb[0].mxu0
    %v2788 = vadd.f32 %v2739, %v2787
    %v2789 = vpop.f32.mrb[0].mxu0
    %2790 = vdwg.mxu0
    %2791 = vmatprep.subr.bf16.mxu0 0
    %2792 = vmatpush1.bf16.msra.mxu0 %v2434
    %2793 = vmatprep.subr.bf16.mxu0 0
    %2794 = vmatpush1.bf16.msra.mxu0 %v2435
    %2795 = vmatprep.subr.bf16.mxu0 0
    %2796 = vmatpush1.bf16.msra.mxu0 %v2436
    %2797 = vmatprep.subr.bf16.mxu0 0
    %2798 = vmatpush1.bf16.msra.mxu0 %v2437
    %2799 = vmatprep.subr.bf16.mxu0 0
    %2800 = vmatpush1.bf16.msra.mxu0 %v2438
    %2801 = vmatprep.subr.bf16.mxu0 0
    %2802 = vmatpush1.bf16.msra.mxu0 %v2439
    %2803 = vmatprep.subr.bf16.mxu0 0
    %2804 = vmatpush1.bf16.msra.mxu0 %v2440
    %2805 = vmatprep.subr.bf16.mxu0 0
    %2806 = vmatpush1.bf16.msra.mxu0 %v2441
    %2807 = vmatprep.subr.bf16.mxu0 0
    %2808 = vmatpush1.bf16.msra.mxu0 %v2442
    %2809 = vmatprep.subr.bf16.mxu0 0
    %2810 = vmatpush1.bf16.msra.mxu0 %v2443
    %2811 = vmatprep.subr.bf16.mxu0 0
    %2812 = vmatpush1.bf16.msra.mxu0 %v2444
    %2813 = vmatprep.subr.bf16.mxu0 0
    %2814 = vmatpush1.bf16.msra.mxu0 %v2445
    %2815 = vmatprep.subr.bf16.mxu0 0
    %2816 = vmatpush1.bf16.msra.mxu0 %v2446
    %2817 = vmatprep.subr.bf16.mxu0 0
    %2818 = vmatpush1.bf16.msra.mxu0 %v2447
    %2819 = vmatprep.subr.bf16.mxu0 0
    %2820 = vmatpush1.bf16.msra.mxu0 %v2448
    %2821 = vmatprep.subr.bf16.mxu0 0
    %2822 = vmatpush1.bf16.msra.mxu0 %v2449
    %2823 = vmatprep.mubr.bf16.mxu0 %v1758
    %2824 = vmatmul.mubr.bf16.gmra.mrb[0].mxu0 %v1757
    %v2825 = vpop.f32.mrb[0].mxu0
    %v2826 = vadd.f32 %v2777, %v2825
    %v2827 = vpop.f32.mrb[0].mxu0
    %v2828 = vpop.f32.mrb[0].mxu0
    %v2829 = vadd.f32 %v2780, %v2828
    %v2830 = vpop.f32.mrb[0].mxu0
    %2831 = vmatprep.mubr.bf16.mxu0 %v1770
    %2832 = vmatmul.mubr.bf16.gmra.mrb[0].mxu0 %v1769
    %v2833 = vpop.f32.mrb[0].mxu0
    %v2834 = vadd.f32 %v2785, %v2833
    %v2835 = vpop.f32.mrb[0].mxu0
    %v2836 = vpop.f32.mrb[0].mxu0
    %v2837 = vadd.f32 %v2788, %v2836
    %v2838 = vpop.f32.mrb[0].mxu0
    %2839 = vdwg.mxu0
    %2840 = vst [vmem:[%s7] sm:$0xff] %v2826
    %2841 = vst [vmem:[%s7 + $0x8] sm:$0xff] %v2829
    %2842 = vst [vmem:[%s7 + $0x10] sm:$0xff] %v2834
    %2843 = vst [vmem:[%s7 + $0x18] sm:$0xff] %v2837
    // Predicated region
    $region38: #{simple_conv_net_forward.1} parent=1 // pred_check
      _
    $region39: #{simple_conv_net_forward.1} parent=1 // pred_check_branch
      %2845 = sbr.rel (0) target = $region41
    $region40: #{simple_conv_net_forward.1} parent=1 // pred_region
      _
    $region41: #{simple_conv_net_forward.1} parent=1 // pred_fallthru
      _
    // Predicated region
    $region42: #{simple_conv_net_forward.1} parent=1 // pred_check
      _
    $region43: #{simple_conv_net_forward.1} parent=1 // pred_check_branch
      %2847 = sbr.rel (0) target = $region45
    $region44: #{simple_conv_net_forward.1} parent=1 // pred_region
      _
    $region45: #{simple_conv_net_forward.1} parent=1 // pred_fallthru
      _
    %2848 = vsyncpa [#allocation3], 1
    %2849 = vsyncpa [#allocation5], 1

</llo_original>
